<compile_context>
chip_gen: v7x
topology: tpu7x:2x2x1
jax: 0.10.0
libtpu: 0.0.40
codegen_flags: <defaults>
</compile_context>

<pallas_src>
import functools

import jax
import jax.numpy as jnp
from jax.experimental import pallas as pl
from jax.experimental.pallas import tpu as pltpu


HEAD_ORDER = ("heatmap", "wh", "offset", "yaw_class", "yaw_res")


# ----------------------------- Pallas kernel --------------------------------
def _fused_head_kernel(x_ref, w1_ref, b1_ref, w2_ref, b2_ref, o_ref, *,
                       th, w_img, c):
    """x_ref : (1, H+2, W+2, C)  bf16  padded NHWC feature (VMEM-resident).
    w1_ref: (3, 3C, 5C)        bf16  packed 3x3 conv weights, per kx tap.
    b1_ref: (1, 5C)            f32   packed 3x3 conv bias.
    b2_ref: (1, OUT)           f32   packed 1x1 conv bias.
    w2_ref: (5C, OUT)          bf16  block-diagonal packed 1x1 conv weights.
    o_ref : (1, TH*W, OUT)     bf16  output rows [it*TH, it*TH+TH), flattened."""
    tm = th * w_img
    kcat = 3 * c

    row0 = pl.program_id(1) * th
    if th % 8 == 0:
        row0 = pl.multiple_of(row0, 8)

    # TH+2 halo rows from the resident padded image (single dynamic read).
    xr = x_ref[0, pl.ds(row0, th + 2), :, :]                # (TH+2, W+2, C)

    # Vertical taps are free major-axis slices; one small in-VMEM concat.
    xcat = jnp.concatenate([xr[ky:ky + th] for ky in range(3)], axis=-1)
    # xcat: (TH, W+2, 3C) bf16

    # 3x3 conv == 3 accumulated MXU matmuls over horizontally shifted views.
    acc = None
    for kx in range(3):                                     # static unroll
        xs = xcat[:, kx:kx + w_img, :].reshape(tm, kcat)
        part = jnp.dot(xs, w1_ref[kx], preferred_element_type=jnp.float32)
        acc = part if acc is None else acc + part

    hid = jnp.maximum(acc + b1_ref[...], 0.0)               # bias + ReLU (f32)
    hid = hid.astype(jnp.bfloat16)                          # bf16 MXU stream

    # Fused 1x1 convs of all 5 heads (block-diagonal packed weights).
    y = jnp.dot(hid, w2_ref[...], preferred_element_type=jnp.float32)
    y = y + b2_ref[...]
    o_ref[0] = y.astype(o_ref.dtype)                        # bf16 store


# ------------------------------ tiling helpers -------------------------------
def _vmem_capacity_bytes():
    try:
        return int(pltpu.get_tpu_info().vmem_capacity_bytes)
    except Exception:
        return 64 * 1024 * 1024        # conservative default (v7x per-core VMEM)


def _pick_tile_rows(batch, h, w, c, hidden, vmem_cap, min_parallel=2):
    """Image rows per grid step (TH).

    TH divides H and TH*W is a multiple of 8 unless TH == H (a full-extent
    block is always legal).  Preference order:
      (1) per-step live VMEM fits a fraction of the per-core capacity,
      (2) at least `min_parallel` grid steps (v7x has 2 TensorCores),
      (3) largest tile (amortize ~0.35us/step overhead, longer DMAs).
    """
    # Rough live bytes per output pixel in one step: f32 acc + bf16 hid
    # (hidden wide), lane-padded y, bf16 xcat + shifted LHS copies, and the
    # double-buffered (128-lane padded in VMEM) bf16 output block.
    per_px = hidden * 6 + 128 * 6 + 12 * c
    static = 2 * (h + 2) * (w + 2) * c * 2 + 4 * (9 * c + 1) * hidden
    budget = max(vmem_cap // 2 - static, 8 * w * per_px)
    target_px = min(8192, budget // per_px)

    cands = [t for t in range(1, h + 1)
             if h % t == 0 and ((t * w) % 8 == 0 or t == h)]

    def score(t):
        px = t * w
        return (px <= target_px, batch * (h // t) >= min_parallel, px)

    return max(cands, key=score)


# --------------------------- one-time param packing --------------------------
def init_head_params(key, in_c, out_c):
    """Deterministic synthetic params, PyTorch (O, I, kh, kw) layout."""
    k1, k2, k3, k4 = jax.random.split(key, 4)
    w1 = jax.random.normal(k1, (in_c, in_c, 3, 3), jnp.float32) / jnp.sqrt(9.0 * in_c)
    b1 = jax.random.normal(k2, (in_c,), jnp.float32) * 0.01
    w2 = jax.random.normal(k3, (out_c, in_c, 1, 1), jnp.float32) / jnp.sqrt(1.0 * in_c)
    b2 = jax.random.normal(k4, (out_c,), jnp.float32) * 0.01
    return (w1, b1, w2, b2)


def init_lidar_centernet_head_params(key, bb_input_channel, num_bb_classes, num_dir_bins):
    names_outs = (
        ("heatmap", num_bb_classes),
        ("wh", 2),
        ("offset", 2),
        ("yaw_class", num_dir_bins),
        ("yaw_res", 1),
    )
    keys = jax.random.split(key, len(names_outs))
    return {name: init_head_params(k, bb_input_channel, out_c)
            for (name, out_c), k in zip(names_outs, keys)}


def pack_lidar_centernet_head_params(params):
    """Hoisted one-time repacking of the 5 heads into fused kernel operands."""
    c = params[HEAD_ORDER[0]][0].shape[1]
    w1_list, b1_list, w2_list, b2_list, couts = [], [], [], [], []
    for name in HEAD_ORDER:
        w1, b1, w2, b2 = params[name]
        w1_list.append(jnp.transpose(w1, (2, 3, 1, 0)))          # (ky, kx, I, O)
        b1_list.append(b1)
        w2_list.append(jnp.transpose(w2[:, :, 0, 0], (1, 0)))    # (I, O)
        b2_list.append(b2)
        couts.append(int(w2.shape[0]))

    n_heads = len(HEAD_ORDER)
    hidden = n_heads * c
    total_out = sum(couts)
    out_cols = max(8, -(-total_out // 8) * 8)   # pad narrowly (multiple of 8)

    # First conv, packed over heads: (kx, ky*C + ci, head*C + co)
    w1_cat = jnp.concatenate(w1_list, axis=-1)                   # (3, 3, C, 5C)
    w1p = jnp.transpose(w1_cat, (1, 0, 2, 3)).reshape(3, 3 * c, hidden)
    b1p = jnp.concatenate(b1_list).reshape(1, hidden)

    # Second conv, block-diagonal, padded only to out_cols columns.
    w2p = jnp.zeros((hidden, out_cols), jnp.float32)
    b2p = jnp.zeros((1, out_cols), jnp.float32)
    col = 0
    for i, (w2h, b2h, co) in enumerate(zip(w2_list, b2_list, couts)):
        w2p = w2p.at[i * c:(i + 1) * c, col:col + co].set(w2h)
        b2p = b2p.at[0, col:col + co].set(b2h)
        col += co

    arrays = dict(
        w1=w1p.astype(jnp.bfloat16),   # bf16 MXU stream (f32 accumulation)
        b1=b1p.astype(jnp.float32),
        w2=w2p.astype(jnp.bfloat16),   # bf16: avoids costly f32 MXU path (esp. v5e)
        b2=b2p.astype(jnp.float32),
    )
    meta = dict(c=c, hidden=hidden, out_cols=out_cols, couts=tuple(couts),
                num_bb_classes=couts[0])
    return arrays, meta


# ------------------------------ forward wrapper -------------------------------
def lidar_centernet_head_forward(feat_nchw, packed, *, meta):
    """Returns (center_heatmap_pred, wh_pred, offset_pred, yaw_class_pred,
    yaw_res_pred) — all NCHW f32, matching the PyTorch module."""
    b, c, h, w = feat_nchw.shape
    assert c == meta["c"]
    hidden, out_cols = meta["hidden"], meta["out_cols"]

    # NHWC, bf16, spatial pad by 1 (single fused XLA pass; no 3x tap gather).
    x = jnp.transpose(feat_nchw, (0, 2, 3, 1)).astype(jnp.bfloat16)
    xp = jnp.pad(x, ((0, 0), (1, 1), (1, 1), (0, 0)))        # (B, H+2, W+2, C)

    vmem_cap = _vmem_capacity_bytes()
    th = _pick_tile_rows(b, h, w, c, hidden, vmem_cap)
    tm = th * w
    grid = (b, h // th)

    kernel = functools.partial(_fused_head_kernel, th=th, w_img=w, c=c)

    cost = pl.CostEstimate(
        flops=2 * b * h * w * (9 * c * hidden + hidden * out_cols),
        transcendentals=0,
        bytes_accessed=(xp.size * 2 + b * h * w * out_cols * 2
                        + packed["w1"].size * 2 + packed["w2"].size * 2
                        + packed["b1"].size * 4 + packed["b2"].size * 4),
    )

    y = pl.pallas_call(
        kernel,
        out_shape=jax.ShapeDtypeStruct((b, h * w, out_cols), jnp.bfloat16),
        grid_spec=pltpu.PrefetchScalarGridSpec(
            num_scalar_prefetch=0,
            grid=grid,
            in_specs=[
                # Full padded image; block index only changes with batch, so it
                # stays VMEM-resident across the row-tile axis (halo for free).
                pl.BlockSpec((1, h + 2, w + 2, c), lambda ib, it: (ib, 0, 0, 0)),
                pl.BlockSpec((3, 3 * c, hidden), lambda ib, it: (0, 0, 0)),
                pl.BlockSpec((1, hidden), lambda ib, it: (0, 0)),
                pl.BlockSpec((hidden, out_cols), lambda ib, it: (0, 0)),
                pl.BlockSpec((1, out_cols), lambda ib, it: (0, 0)),
            ],
            out_specs=pl.BlockSpec((1, tm, out_cols), lambda ib, it: (ib, it, 0)),
        ),
        compiler_params=pltpu.CompilerParams(
            dimension_semantics=("parallel", "parallel"),
            vmem_limit_bytes=min(int(vmem_cap * 3 // 4), 100 * 1024 * 1024)),
        cost_estimate=cost,
    )(xp, packed["w1"], packed["b1"], packed["w2"], packed["b2"])

    # Split heads, back to NCHW f32; sigmoid applied ONLY here (heatmap).
    y = y.reshape(b, h, w, out_cols)
    outs, col = [], 0
    for i, co in enumerate(meta["couts"]):
        head = jnp.transpose(y[..., col:col + co], (0, 3, 1, 2)).astype(jnp.float32)
        if i == 0:
            head = jax.nn.sigmoid(head)
        outs.append(head)
        col += co
    return tuple(outs)


# --------------------------- pure-JAX reference ------------------------------
def _ref_head(feat_nchw, w1, b1, w2, b2, apply_sigmoid):
    y = jax.lax.conv_general_dilated(
        feat_nchw, w1, (1, 1), "SAME",
        dimension_numbers=("NCHW", "OIHW", "NCHW"))
    y = jax.nn.relu(y + b1[None, :, None, None])
    y = jax.lax.conv_general_dilated(
        y, w2, (1, 1), "VALID",
        dimension_numbers=("NCHW", "OIHW", "NCHW"))
    y = y + b2[None, :, None, None]
    if apply_sigmoid:
        y = jax.nn.sigmoid(y)
    return y


if __name__ == "__main__":
    # Small config consistent with the module's __init__.
    bb_input_channel = 32
    num_bb_classes = 4
    num_dir_bins = 8
    B, H, W = 2, 16, 16

    key = jax.random.PRNGKey(0)
    k_feat, k_params = jax.random.split(key)
    feat = jax.random.normal(k_feat, (B, bb_input_channel, H, W), jnp.float32)
    params = init_lidar_centernet_head_params(
        k_params, bb_input_channel, num_bb_classes, num_dir_bins)

    packed, meta = pack_lidar_centernet_head_params(params)
    fwd = jax.jit(functools.partial(lidar_centernet_head_forward, meta=meta))
    outs = jax.block_until_ready(fwd(feat, packed))

    # Sanity check against a pure-JAX f32 conv reference.  Tolerance reflects
    # bf16 streaming of feature / conv weights / hidden / output (f32 accum).
    names_flags = (("heatmap", True), ("wh", False), ("offset", False),
                   ("yaw_class", False), ("yaw_res", False))
    for (name, sig), got in zip(names_flags, outs):
        w1, b1, w2, b2 = params[name]
        ref = _ref_head(feat, w1, b1, w2, b2, sig)
        assert got.shape == ref.shape, (name, got.shape, ref.shape)
        assert jnp.allclose(got, ref, atol=5e-2, rtol=5e-2), (
            name, float(jnp.max(jnp.abs(got - ref))))

    print("KERNEL_OK")
</pallas_src>

<mosaic_0001>
module attributes {stable_mosaic.version = 11 : i64} {
  func.func @_fused_head_kernel(%arg0: i32, %arg1: i32, %arg2: memref<1x18x18x32xbf16, #tpu.memory_space<vmem>>, %arg3: memref<3x96x160xbf16, #tpu.memory_space<vmem>>, %arg4: memref<1x160xf32, #tpu.memory_space<vmem>>, %arg5: memref<160x24xbf16, #tpu.memory_space<vmem>>, %arg6: memref<1x24xf32, #tpu.memory_space<vmem>>, %arg7: memref<1x256x24xbf16, #tpu.memory_space<vmem>>) attributes {dimension_semantics = [#tpu.dimension_semantics<parallel>, #tpu.dimension_semantics<parallel>], iteration_bounds = array<i64: 2, 1>, scalar_prefetch = 0 : i64, scratch_operands = 0 : i64, tpu.core_type = #tpu.core_type<tc>, window_params = [{transform_indices = @transform_0, window_bounds = array<i64: 1, 18, 18, 32>}, {pipeline_mode = #tpu.pipeline_mode<synchronous>, transform_indices = @transform_1, window_bounds = array<i64: 3, 96, 160>}, {pipeline_mode = #tpu.pipeline_mode<synchronous>, transform_indices = @transform_2, window_bounds = array<i64: 1, 160>}, {pipeline_mode = #tpu.pipeline_mode<synchronous>, transform_indices = @transform_3, window_bounds = array<i64: 160, 24>}, {pipeline_mode = #tpu.pipeline_mode<synchronous>, transform_indices = @transform_4, window_bounds = array<i64: 1, 24>}, {transform_indices = @transform_5, window_bounds = array<i64: 1, 256, 24>}]} {
    %c16_i32 = arith.constant 16 : i32
    %0 = arith.muli %arg1, %c16_i32 : i32
    %1 = tpu.assume_multiple %0, 8 : i32
    %c0 = arith.constant 0 : index
    %2 = arith.index_cast %1 : i32 to index
    %c0_0 = arith.constant 0 : index
    %c0_1 = arith.constant 0 : index
    %3 = vector.load %arg2[%c0, %2, %c0_0, %c0_1] : memref<1x18x18x32xbf16, #tpu.memory_space<vmem>>, vector<1x18x18x32xbf16>
    %4 = vector.shape_cast %3 : vector<1x18x18x32xbf16> to vector<18x18x32xbf16>
    %5 = vector.extract_strided_slice %4 {offsets = [0, 0, 0], sizes = [16, 18, 32], strides = [1, 1, 1]} : vector<18x18x32xbf16> to vector<16x18x32xbf16>
    %6 = vector.extract_strided_slice %4 {offsets = [1, 0, 0], sizes = [16, 18, 32], strides = [1, 1, 1]} : vector<18x18x32xbf16> to vector<16x18x32xbf16>
    %7 = vector.extract_strided_slice %4 {offsets = [2, 0, 0], sizes = [16, 18, 32], strides = [1, 1, 1]} : vector<18x18x32xbf16> to vector<16x18x32xbf16>
    %8 = tpu.concatenate %5, %6, %7 in 2 : vector<16x18x32xbf16>, vector<16x18x32xbf16>, vector<16x18x32xbf16> -> vector<16x18x96xbf16>
    %9 = vector.extract_strided_slice %8 {offsets = [0, 0, 0], sizes = [16, 16, 96], strides = [1, 1, 1]} : vector<16x18x96xbf16> to vector<16x16x96xbf16>
    %10 = vector.shape_cast %9 : vector<16x16x96xbf16> to vector<256x96xbf16>
    %c0_2 = arith.constant 0 : index
    %c0_3 = arith.constant 0 : index
    %c0_4 = arith.constant 0 : index
    %11 = vector.load %arg3[%c0_2, %c0_3, %c0_4] : memref<3x96x160xbf16, #tpu.memory_space<vmem>>, vector<1x96x160xbf16>
    %12 = vector.shape_cast %11 : vector<1x96x160xbf16> to vector<96x160xbf16>
    %cst = arith.constant dense<0.000000e+00> : vector<256x160xf32>
    %13 = tpu.matmul %10, %12, %cst {dimension_numbers = #tpu.dot_dimension_numbers<[1], [0], [0], [1], [0, 0, 1, 1], [], []>} : vector<256x96xbf16>, vector<96x160xbf16>, vector<256x160xf32> -> vector<256x160xf32>
    %14 = vector.extract_strided_slice %8 {offsets = [0, 1, 0], sizes = [16, 16, 96], strides = [1, 1, 1]} : vector<16x18x96xbf16> to vector<16x16x96xbf16>
    %15 = vector.shape_cast %14 : vector<16x16x96xbf16> to vector<256x96xbf16>
    %c1 = arith.constant 1 : index
    %c0_5 = arith.constant 0 : index
    %c0_6 = arith.constant 0 : index
    %16 = vector.load %arg3[%c1, %c0_5, %c0_6] : memref<3x96x160xbf16, #tpu.memory_space<vmem>>, vector<1x96x160xbf16>
    %17 = vector.shape_cast %16 : vector<1x96x160xbf16> to vector<96x160xbf16>
    %cst_7 = arith.constant dense<0.000000e+00> : vector<256x160xf32>
    %18 = tpu.matmul %15, %17, %cst_7 {dimension_numbers = #tpu.dot_dimension_numbers<[1], [0], [0], [1], [0, 0, 1, 1], [], []>} : vector<256x96xbf16>, vector<96x160xbf16>, vector<256x160xf32> -> vector<256x160xf32>
    %19 = arith.addf %13, %18 : vector<256x160xf32>
    %20 = vector.extract_strided_slice %8 {offsets = [0, 2, 0], sizes = [16, 16, 96], strides = [1, 1, 1]} : vector<16x18x96xbf16> to vector<16x16x96xbf16>
    %21 = vector.shape_cast %20 : vector<16x16x96xbf16> to vector<256x96xbf16>
    %c2 = arith.constant 2 : index
    %c0_8 = arith.constant 0 : index
    %c0_9 = arith.constant 0 : index
    %22 = vector.load %arg3[%c2, %c0_8, %c0_9] : memref<3x96x160xbf16, #tpu.memory_space<vmem>>, vector<1x96x160xbf16>
    %23 = vector.shape_cast %22 : vector<1x96x160xbf16> to vector<96x160xbf16>
    %cst_10 = arith.constant dense<0.000000e+00> : vector<256x160xf32>
    %24 = tpu.matmul %21, %23, %cst_10 {dimension_numbers = #tpu.dot_dimension_numbers<[1], [0], [0], [1], [0, 0, 1, 1], [], []>} : vector<256x96xbf16>, vector<96x160xbf16>, vector<256x160xf32> -> vector<256x160xf32>
    %25 = arith.addf %19, %24 : vector<256x160xf32>
    %c0_11 = arith.constant 0 : index
    %c0_12 = arith.constant 0 : index
    %26 = vector.load %arg4[%c0_11, %c0_12] : memref<1x160xf32, #tpu.memory_space<vmem>>, vector<1x160xf32>
    %27 = vector.broadcast %26 : vector<1x160xf32> to vector<256x160xf32>
    %28 = arith.addf %25, %27 : vector<256x160xf32>
    %cst_13 = arith.constant 0.000000e+00 : f32
    %29 = vector.broadcast %cst_13 : f32 to vector<256x160xf32>
    %30 = arith.maximumf %28, %29 : vector<256x160xf32>
    %31 = arith.truncf %30 : vector<256x160xf32> to vector<256x160xbf16>
    %c0_14 = arith.constant 0 : index
    %c0_15 = arith.constant 0 : index
    %32 = vector.load %arg5[%c0_14, %c0_15] : memref<160x24xbf16, #tpu.memory_space<vmem>>, vector<160x24xbf16>
    %cst_16 = arith.constant dense<0.000000e+00> : vector<256x24xf32>
    %33 = tpu.matmul %31, %32, %cst_16 {dimension_numbers = #tpu.dot_dimension_numbers<[1], [0], [0], [1], [0, 0, 1, 1], [], []>} : vector<256x160xbf16>, vector<160x24xbf16>, vector<256x24xf32> -> vector<256x24xf32>
    %c0_17 = arith.constant 0 : index
    %c0_18 = arith.constant 0 : index
    %34 = vector.load %arg6[%c0_17, %c0_18] : memref<1x24xf32, #tpu.memory_space<vmem>>, vector<1x24xf32>
    %35 = vector.broadcast %34 : vector<1x24xf32> to vector<256x24xf32>
    %36 = arith.addf %33, %35 : vector<256x24xf32>
    %37 = arith.truncf %36 : vector<256x24xf32> to vector<256x24xbf16>
    %c0_19 = arith.constant 0 : index
    %c0_20 = arith.constant 0 : index
    %c0_21 = arith.constant 0 : index
    %38 = vector.load %arg7[%c0_19, %c0_20, %c0_21] : memref<1x256x24xbf16, #tpu.memory_space<vmem>>, vector<1x256x24xbf16>
    %39 = vector.shape_cast %38 : vector<1x256x24xbf16> to vector<256x24xbf16>
    %40 = vector.shape_cast %37 : vector<256x24xbf16> to vector<1x256x24xbf16>
    tpu.vector_store %arg7[%c0_19, %c0_20, %c0_21], %40 {strides = array<i32>} : memref<1x256x24xbf16, #tpu.memory_space<vmem>>, vector<1x256x24xbf16>,
    return
  }
  func.func @transform_0(%arg0: i32, %arg1: i32) -> (i32, i32, i32, i32) {
    %c0_i32 = arith.constant 0 : i32
    %c0_i32_0 = arith.constant 0 : i32
    %c0_i32_1 = arith.constant 0 : i32
    %c0_i32_2 = arith.constant 0 : i32
    return %arg0, %c0_i32, %c0_i32_0, %c0_i32_1 : i32, i32, i32, i32
  }
  func.func @transform_1(%arg0: i32, %arg1: i32) -> (i32, i32, i32) {
    %c0_i32 = arith.constant 0 : i32
    %c0_i32_0 = arith.constant 0 : i32
    %c0_i32_1 = arith.constant 0 : i32
    %c0_i32_2 = arith.constant 0 : i32
    return %c0_i32, %c0_i32_0, %c0_i32_1 : i32, i32, i32
  }
  func.func @transform_2(%arg0: i32, %arg1: i32) -> (i32, i32) {
    %c0_i32 = arith.constant 0 : i32
    %c0_i32_0 = arith.constant 0 : i32
    %c0_i32_1 = arith.constant 0 : i32
    return %c0_i32, %c0_i32_0 : i32, i32
  }
  func.func @transform_3(%arg0: i32, %arg1: i32) -> (i32, i32) {
    %c0_i32 = arith.constant 0 : i32
    %c0_i32_0 = arith.constant 0 : i32
    %c0_i32_1 = arith.constant 0 : i32
    return %c0_i32, %c0_i32_0 : i32, i32
  }
  func.func @transform_4(%arg0: i32, %arg1: i32) -> (i32, i32) {
    %c0_i32 = arith.constant 0 : i32
    %c0_i32_0 = arith.constant 0 : i32
    %c0_i32_1 = arith.constant 0 : i32
    return %c0_i32, %c0_i32_0 : i32, i32
  }
  func.func @transform_5(%arg0: i32, %arg1: i32) -> (i32, i32, i32) {
    %c0_i32 = arith.constant 0 : i32
    %c0_i32_0 = arith.constant 0 : i32
    return %arg0, %arg1, %c0_i32 : i32, i32, i32
  }
}

</mosaic_0001>

<llo_original>
// kernel: lidar_centernet_head_forward.1
$region0: #{lidar_centernet_head_forward.1}
  #allocation0 [shape = 'u32[]', space=smem, size = 0x4, offset = 0x4, fixed_abs, tag = 'smem constant byte address 0x4 - core index']
  #allocation1 [shape = 'u32[144,128]{1,0:T(1,128)}', space=vmem, size = 0x12000, scoped, tag = 'internal scratch']
  %s0 = inlined_call_operand.vmem [shape: bf16[2,18,18,32], index: 0, kind: input, shape index: {}]
  %s1 = inlined_call_operand.vmem [shape: bf16[3,96,160], index: 1, kind: input, shape index: {}]
  %s2 = inlined_call_operand.vmem [shape: f32[1,160], index: 2, kind: input, shape index: {}]
  %s3 = inlined_call_operand.vmem [shape: bf16[160,24], index: 3, kind: input, shape index: {}]
  %s4 = inlined_call_operand.vmem [shape: f32[1,24], index: 4, kind: input, shape index: {}]
  %s5 = inlined_call_operand.vmem [shape: bf16[2,256,24], index: 5, kind: output, shape index: {}]
  %s6 = sld [smem:[#allocation0]]
  $region53: #{lidar_centernet_head_forward.1} parent=0
    _
  %s8 = ssub.s32 1, %s6
  %s9 = scalar_select 0, %s8, %s6
  loop: start=0, step=1, limit=4
  $region2: #{lidar_centernet_head_forward.1} parent=0 // loop_pre_header
    _
  $region3: #{lidar_centernet_head_forward.1} parent=0 // loop_header
    %s11 = sphi 0, %s15
    %p12 = scmp.ge.s32.totalorder %s11, 4
    %s18 = sphi 0, %s30
    %s19 = sphi 0, %s26
    %s20 = sphi 0, %s18
    %s21 = sphi 0, %s19
    %s22 = sphi 0, %s20
    %s23 = sphi 0, %s21
    %s33 = sphi 0, %s35
    %s36 = sphi 0, %s33
    %s37 = sphi 0, %s36
    %s53 = sphi 0, %s37
    %s57 = sphi 0, %s57
    %s59 = sphi 0, %s57
    %s60 = sphi 0, %s59
    %s74 = sphi 0, %s60
    %s78 = sphi 0, %s78
    %s80 = sphi 0, %s78
    %s81 = sphi 0, %s80
    %s95 = sphi 0, %s81
    %s99 = sphi 0, %s99
    %s101 = sphi 0, %s99
    %s102 = sphi 0, %s101
    %s116 = sphi 0, %s102
    %s120 = sphi 0, %s120
    %s122 = sphi 0, %s120
    %s123 = sphi 0, %s122
    %s137 = sphi 0, %s123
    %s145 = sphi 0, %s147
    %s148 = sphi 0, %s145
    %s149 = sphi 0, %s148
    %s165 = sphi 0, %s149
  $region4: #{lidar_centernet_head_forward.1} parent=0 // loop_header_branch
    %14 = sbr.rel (%p12) target = $region8
  $region5: #{lidar_centernet_head_forward.1} parent=0 // loop_body
    %s16 = ssub.s32 %s11, 1
    %s17 = ssub.s32 %s11, 2
    %s24 = sadd.s32 1, %s19
    %p25 = scmp.ge.s32.totalorder %s24, 1
    %s26 = scalar_select %p25, 0, %s24
    %s27 = sadd.s32 1, %s18
    %s28 = scalar_select %p25, %s27, %s18
    %p29 = scmp.ge.s32.totalorder %s28, 2
    %s30 = scalar_select %p29, 0, %s28
    %s31 = ssub.s32 %s18, %s30
    %p32 = scmp.eq.s32.totalorder %s31, 0
    %s34 = sadd.s32 %s33, 1
    %s35 = scalar_select %p32, %s33, %s34
    %p38 = pneg %p32
    %p39 = scmp.eq.s32.totalorder %s11, 1
    %p40 = por %p38, %p39
    %p41 = scmp.ne.s32.totalorder %s33, %s36
    %p42 = scmp.eq.s32.totalorder %s11, 0
    %p43 = por %p41, %p42
    %p44 = scmp.ne.s32.totalorder %s33, %s36
    %p45 = scmp.eq.s32.totalorder %s16, 1
    %p46 = por %p44, %p45
    %p47 = scmp.ne.s32.totalorder %s36, %s37
    %p48 = scmp.eq.s32.totalorder %s16, 0
    %p49 = por %p47, %p48
    %p50 = scmp.ne.s32.totalorder %s36, %s37
    %p51 = scmp.eq.s32.totalorder %s17, 1
    %p52 = por %p50, %p51
    %p54 = scmp.ne.s32.totalorder %s37, %s53
    %p55 = scmp.eq.s32.totalorder %s17, 0
    %p56 = por %p54, %p55
    %s58 = sadd.s32 %s57, 1
    %p61 = scmp.eq.s32.totalorder %s11, 1
    %p62 = scmp.ne.s32.totalorder %s57, %s59
    %p63 = scmp.eq.s32.totalorder %s11, 0
    %p64 = por %p62, %p63
    %p65 = scmp.ne.s32.totalorder %s57, %s59
    %p66 = scmp.eq.s32.totalorder %s16, 1
    %p67 = por %p65, %p66
    %p68 = scmp.ne.s32.totalorder %s59, %s60
    %p69 = scmp.eq.s32.totalorder %s16, 0
    %p70 = por %p68, %p69
    %p71 = scmp.ne.s32.totalorder %s59, %s60
    %p72 = scmp.eq.s32.totalorder %s17, 1
    %p73 = por %p71, %p72
    %p75 = scmp.ne.s32.totalorder %s60, %s74
    %p76 = scmp.eq.s32.totalorder %s17, 0
    %p77 = por %p75, %p76
    %s79 = sadd.s32 %s78, 1
    %p82 = scmp.eq.s32.totalorder %s11, 1
    %p83 = scmp.ne.s32.totalorder %s78, %s80
    %p84 = scmp.eq.s32.totalorder %s11, 0
    %p85 = por %p83, %p84
    %p86 = scmp.ne.s32.totalorder %s78, %s80
    %p87 = scmp.eq.s32.totalorder %s16, 1
    %p88 = por %p86, %p87
    %p89 = scmp.ne.s32.totalorder %s80, %s81
    %p90 = scmp.eq.s32.totalorder %s16, 0
    %p91 = por %p89, %p90
    %p92 = scmp.ne.s32.totalorder %s80, %s81
    %p93 = scmp.eq.s32.totalorder %s17, 1
    %p94 = por %p92, %p93
    %p96 = scmp.ne.s32.totalorder %s81, %s95
    %p97 = scmp.eq.s32.totalorder %s17, 0
    %p98 = por %p96, %p97
    %s100 = sadd.s32 %s99, 1
    %p103 = scmp.eq.s32.totalorder %s11, 1
    %p104 = scmp.ne.s32.totalorder %s99, %s101
    %p105 = scmp.eq.s32.totalorder %s11, 0
    %p106 = por %p104, %p105
    %p107 = scmp.ne.s32.totalorder %s99, %s101
    %p108 = scmp.eq.s32.totalorder %s16, 1
    %p109 = por %p107, %p108
    %p110 = scmp.ne.s32.totalorder %s101, %s102
    %p111 = scmp.eq.s32.totalorder %s16, 0
    %p112 = por %p110, %p111
    %p113 = scmp.ne.s32.totalorder %s101, %s102
    %p114 = scmp.eq.s32.totalorder %s17, 1
    %p115 = por %p113, %p114
    %p117 = scmp.ne.s32.totalorder %s102, %s116
    %p118 = scmp.eq.s32.totalorder %s17, 0
    %p119 = por %p117, %p118
    %s121 = sadd.s32 %s120, 1
    %p124 = scmp.eq.s32.totalorder %s11, 1
    %p125 = scmp.ne.s32.totalorder %s120, %s122
    %p126 = scmp.eq.s32.totalorder %s11, 0
    %p127 = por %p125, %p126
    %p128 = scmp.ne.s32.totalorder %s120, %s122
    %p129 = scmp.eq.s32.totalorder %s16, 1
    %p130 = por %p128, %p129
    %p131 = scmp.ne.s32.totalorder %s122, %s123
    %p132 = scmp.eq.s32.totalorder %s16, 0
    %p133 = por %p131, %p132
    %p134 = scmp.ne.s32.totalorder %s122, %s123
    %p135 = scmp.eq.s32.totalorder %s17, 1
    %p136 = por %p134, %p135
    %p138 = scmp.ne.s32.totalorder %s123, %s137
    %p139 = scmp.eq.s32.totalorder %s17, 0
    %p140 = por %p138, %p139
    %s141 = ssub.s32 %s18, %s30
    %s142 = ssub.s32 %s19, %s26
    %s143 = sor.u32 %s141, %s142
    %p144 = scmp.eq.s32.totalorder %s143, 0
    %s146 = sadd.s32 %s145, 1
    %s147 = scalar_select %p144, %s145, %s146
    %p150 = pneg %p144
    %p151 = scmp.eq.s32.totalorder %s11, 1
    %p152 = por %p150, %p151
    %p153 = scmp.ne.s32.totalorder %s145, %s148
    %p154 = scmp.eq.s32.totalorder %s11, 0
    %p155 = por %p153, %p154
    %p156 = scmp.ne.s32.totalorder %s145, %s148
    %p157 = scmp.eq.s32.totalorder %s16, 1
    %p158 = por %p156, %p157
    %p159 = scmp.ne.s32.totalorder %s148, %s149
    %p160 = scmp.eq.s32.totalorder %s16, 0
    %p161 = por %p159, %p160
    %p162 = scmp.ne.s32.totalorder %s148, %s149
    %p163 = scmp.eq.s32.totalorder %s17, 1
    %p164 = por %p162, %p163
    %p166 = scmp.ne.s32.totalorder %s149, %s165
    %p167 = scmp.eq.s32.totalorder %s17, 0
    %p168 = por %p166, %p167
    %p169 = scmp.le.s32.totalorder 1, %s11
    %p170 = scmp.lt.s32.totalorder %s11, 3
    %p171 = pnand %p169, %p170
    %p172 = pneg %p171
    // Predicated region
    $region9: #{lidar_centernet_head_forward.1} parent=5 // pred_check
      _
    $region10: #{lidar_centernet_head_forward.1} parent=5 // pred_check_branch
      %174 = sbr.rel (%p171) target = $region12
    $region11: #{lidar_centernet_head_forward.1} parent=5 // pred_region
      %s175 = ssub.s32 %s11, 1
      // Predicated region
      $region13: #{lidar_centernet_head_forward.1} parent=11 // pred_check
        %p176 = pneg %p70
      $region14: #{lidar_centernet_head_forward.1} parent=11 // pred_check_branch
        %178 = sbr.rel (%p176) target = $region16
      $region15: #{lidar_centernet_head_forward.1} parent=11 // pred_region
        _
      $region16: #{lidar_centernet_head_forward.1} parent=11 // pred_fallthru
        _
      // Predicated region
      $region17: #{lidar_centernet_head_forward.1} parent=11 // pred_check
        %p179 = pneg %p91
      $region18: #{lidar_centernet_head_forward.1} parent=11 // pred_check_branch
        %181 = sbr.rel (%p179) target = $region20
      $region19: #{lidar_centernet_head_forward.1} parent=11 // pred_region
        _
      $region20: #{lidar_centernet_head_forward.1} parent=11 // pred_fallthru
        _
      // Predicated region
      $region21: #{lidar_centernet_head_forward.1} parent=11 // pred_check
        %p182 = pneg %p112
      $region22: #{lidar_centernet_head_forward.1} parent=11 // pred_check_branch
        %184 = sbr.rel (%p182) target = $region24
      $region23: #{lidar_centernet_head_forward.1} parent=11 // pred_region
        _
      $region24: #{lidar_centernet_head_forward.1} parent=11 // pred_fallthru
        _
      // Predicated region
      $region25: #{lidar_centernet_head_forward.1} parent=11 // pred_check
        %p185 = pneg %p133
      $region26: #{lidar_centernet_head_forward.1} parent=11 // pred_check_branch
        %187 = sbr.rel (%p185) target = $region28
      $region27: #{lidar_centernet_head_forward.1} parent=11 // pred_region
        _
      $region28: #{lidar_centernet_head_forward.1} parent=11 // pred_fallthru
        _
    $region12: #{lidar_centernet_head_forward.1} parent=5 // pred_fallthru
      _
    %p188 = scmp.lt.s32.totalorder %s11, 2
    // Predicated region
    $region29: #{lidar_centernet_head_forward.1} parent=5 // pred_check
      %p189 = pneg %p188
    $region30: #{lidar_centernet_head_forward.1} parent=5 // pred_check_branch
      %191 = sbr.rel (%p189) target = $region32
    $region31: #{lidar_centernet_head_forward.1} parent=5 // pred_region
      // Predicated region
      $region33: #{lidar_centernet_head_forward.1} parent=31 // pred_check
        %p192 = pneg %p43
      $region34: #{lidar_centernet_head_forward.1} parent=31 // pred_check_branch
        %194 = sbr.rel (%p192) target = $region36
      $region35: #{lidar_centernet_head_forward.1} parent=31 // pred_region
        %p195 = scmp.lt.s32.totalorder %s18, 1
        %s196 = scalar_select %p195, %s18, 1
        %s197 = smul.addr %s196, 54
        %s198 = smul.addr %s197, 4
        %s199 = scalar_lea.vmem %s0, %s198
      $region36: #{lidar_centernet_head_forward.1} parent=31 // pred_fallthru
        _
    $region32: #{lidar_centernet_head_forward.1} parent=5 // pred_fallthru
      _
    %p200 = scmp.le.s32.totalorder 1, %s11
    %p201 = scmp.lt.s32.totalorder %s11, 3
    %p202 = pnand %p200, %p201
    %p203 = pneg %p202
    // Predicated region
    $region37: #{lidar_centernet_head_forward.1} parent=5 // pred_check
      _
    $region38: #{lidar_centernet_head_forward.1} parent=5 // pred_check_branch
      %205 = sbr.rel (%p202) target = $region40
    $region39: #{lidar_centernet_head_forward.1} parent=5 // pred_region
      %s206 = ssub.s32 %s11, 1
      %p207 = scmp.lt.s32.totalorder %s20, 1
      %s208 = scalar_select %p207, %s20, 1
      %s209 = smul.addr %s208, 54
      %s210 = smul.addr %s209, 4
      %s211 = scalar_lea.vmem %s0, %s210
      %p212 = pneg %p49
      %p213 = pneg %p46
      %p214 = pneg %p70
      %p215 = pneg %p67
      %p216 = pneg %p91
      %p217 = pneg %p88
      %p218 = pneg %p112
      %p219 = pneg %p109
      %p220 = pneg %p133
      %p221 = pneg %p130
      %p222 = pneg %p161
      %p223 = pneg %p158
      %s224 = smul.u32 32, %s21
      %p225 = scmp.lt.s32.totalorder %s20, 1
      %s226 = scalar_select %p225, %s20, 1
      %p227 = scmp.lt.s32.totalorder %s224, 31
      %s228 = scalar_select %p227, %s224, 31
      %s229 = smul.addr %s226, 32
      %s230 = sadd.s32 %s228, %s229
      %s231 = smul.addr %s230, 4
      %s232 = scalar_lea.vmem %s5, %s231
      %p233 = scmp.lt.s32.totalorder %s20, 1
      %s234 = scalar_select %p233, %s20, 1
      %s235 = smul.addr %s234, 54
      %s236 = smul.addr %s235, 4
      %s237 = scalar_lea.vmem %s0, %s236
      %s238 = smul.u32 32, %s21
      %p239 = scmp.lt.s32.totalorder %s20, 1
      %s240 = scalar_select %p239, %s20, 1
      %p241 = scmp.lt.s32.totalorder %s238, 31
      %s242 = scalar_select %p241, %s238, 31
      %s243 = smul.addr %s240, 32
      %s244 = sadd.s32 %s242, %s243
      %s245 = smul.addr %s244, 4
      %s246 = scalar_lea.vmem %s5, %s245
      %s247 = smul.u32 32, %s21
      %s249 = smul.u32 %s21, 16
      %s250 = smul.u32 %s249, 3
      %s251 = smul.addr %s250, 4
      %s252 = scalar_lea.vmem %s237, %s251
      %v253 = vld [vmem:[%s252] sm:$0xf]
      %v254 = vld [vmem:[%s252 + $0x4] sm:$0xf]
      %v255 = vld [vmem:[%s252 + $0x8] sm:$0x1]
      %v256 = vld [vmem:[%s252 + $0xc] sm:$0xf]
      %v257 = vld [vmem:[%s252 + $0x10] sm:$0xf]
      %v258 = vld [vmem:[%s252 + $0x14] sm:$0x1]
      %v259 = vld [vmem:[%s252 + $0x18] sm:$0xf]
      %v260 = vld [vmem:[%s252 + $0x1c] sm:$0xf]
      %v261 = vld [vmem:[%s252 + $0x20] sm:$0x1]
      %v262 = vld [vmem:[%s252 + $0x24] sm:$0xf]
      %v263 = vld [vmem:[%s252 + $0x28] sm:$0xf]
      %v264 = vld [vmem:[%s252 + $0x2c] sm:$0x1]
      %v265 = vld [vmem:[%s252 + $0x30] sm:$0xf]
      %v266 = vld [vmem:[%s252 + $0x34] sm:$0xf]
      %v267 = vld [vmem:[%s252 + $0x38] sm:$0x1]
      %v268 = vld [vmem:[%s252 + $0x3c] sm:$0xf]
      %v269 = vld [vmem:[%s252 + $0x40] sm:$0xf]
      %v270 = vld [vmem:[%s252 + $0x44] sm:$0x1]
      %v271 = vld [vmem:[%s252 + $0x48] sm:$0xf]
      %v272 = vld [vmem:[%s252 + $0x4c] sm:$0xf]
      %v273 = vld [vmem:[%s252 + $0x50] sm:$0x1]
      %v274 = vld [vmem:[%s252 + $0x54] sm:$0xf]
      %v275 = vld [vmem:[%s252 + $0x58] sm:$0xf]
      %v276 = vld [vmem:[%s252 + $0x5c] sm:$0x1]
      %v277 = vld [vmem:[%s252 + $0x60] sm:$0xf]
      %v278 = vld [vmem:[%s252 + $0x64] sm:$0xf]
      %v279 = vld [vmem:[%s252 + $0x68] sm:$0x1]
      %v280 = vld [vmem:[%s252 + $0x6c] sm:$0xf]
      %v281 = vld [vmem:[%s252 + $0x70] sm:$0xf]
      %v282 = vld [vmem:[%s252 + $0x74] sm:$0x1]
      %v283 = vld [vmem:[%s252 + $0x78] sm:$0xf]
      %v284 = vld [vmem:[%s252 + $0x7c] sm:$0xf]
      %v285 = vld [vmem:[%s252 + $0x80] sm:$0x1]
      %v286 = vld [vmem:[%s252 + $0x84] sm:$0xf]
      %v287 = vld [vmem:[%s252 + $0x88] sm:$0xf]
      %v288 = vld [vmem:[%s252 + $0x8c] sm:$0x1]
      %v289 = vld [vmem:[%s252 + $0x90] sm:$0xf]
      %v290 = vld [vmem:[%s252 + $0x94] sm:$0xf]
      %v291 = vld [vmem:[%s252 + $0x98] sm:$0x1]
      %v292 = vld [vmem:[%s252 + $0x9c] sm:$0xf]
      %v293 = vld [vmem:[%s252 + $0xa0] sm:$0xf]
      %v294 = vld [vmem:[%s252 + $0xa4] sm:$0x1]
      %v295 = vld [vmem:[%s252 + $0xa8] sm:$0xf]
      %v296 = vld [vmem:[%s252 + $0xac] sm:$0xf]
      %v297 = vld [vmem:[%s252 + $0xb0] sm:$0x1]
      %v298 = vld [vmem:[%s252 + $0xb4] sm:$0xf]
      %v299 = vld [vmem:[%s252 + $0xb8] sm:$0xf]
      %v300 = vld [vmem:[%s252 + $0xbc] sm:$0x1]
      %v301 = vld [vmem:[%s252 + $0xc0] sm:$0xf]
      %v302 = vld [vmem:[%s252 + $0xc4] sm:$0xf]
      %v303 = vld [vmem:[%s252 + $0xc8] sm:$0x1]
      %v304 = vld [vmem:[%s252 + $0xcc] sm:$0xf]
      %v305 = vld [vmem:[%s252 + $0xd0] sm:$0xf]
      %v306 = vld [vmem:[%s252 + $0xd4] sm:$0x1]
      %v355 = vunpack.c.l.b16 %v253
      %v356 = vunpack.c.l.b16 %v254
      %v357 = vunpack.c.l.b16 %v255
      %v358 = vunpack.c.l.b16 %v256
      %v359 = vunpack.c.l.b16 %v257
      %v360 = vunpack.c.l.b16 %v258
      %v361 = vunpack.c.l.b16 %v259
      %v362 = vunpack.c.l.b16 %v260
      %v363 = vunpack.c.l.b16 %v261
      %v364 = vunpack.c.l.b16 %v262
      %v365 = vunpack.c.l.b16 %v263
      %v366 = vunpack.c.l.b16 %v264
      %v367 = vunpack.c.l.b16 %v265
      %v368 = vunpack.c.l.b16 %v266
      %v369 = vunpack.c.l.b16 %v267
      %v370 = vunpack.c.l.b16 %v268
      %v371 = vunpack.c.l.b16 %v269
      %v372 = vunpack.c.l.b16 %v270
      %v373 = vunpack.c.l.b16 %v271
      %v374 = vunpack.c.l.b16 %v272
      %v375 = vunpack.c.l.b16 %v273
      %v376 = vunpack.c.l.b16 %v274
      %v377 = vunpack.c.l.b16 %v275
      %v378 = vunpack.c.l.b16 %v276
      %v379 = vunpack.c.l.b16 %v277
      %v380 = vunpack.c.l.b16 %v278
      %v381 = vunpack.c.l.b16 %v279
      %v382 = vunpack.c.l.b16 %v280
      %v383 = vunpack.c.l.b16 %v281
      %v384 = vunpack.c.l.b16 %v282
      %v385 = vunpack.c.l.b16 %v283
      %v386 = vunpack.c.l.b16 %v284
      %v387 = vunpack.c.l.b16 %v285
      %v388 = vunpack.c.l.b16 %v286
      %v389 = vunpack.c.l.b16 %v287
      %v390 = vunpack.c.l.b16 %v288
      %v391 = vunpack.c.l.b16 %v289
      %v392 = vunpack.c.l.b16 %v290
      %v393 = vunpack.c.l.b16 %v291
      %v394 = vunpack.c.l.b16 %v292
      %v395 = vunpack.c.l.b16 %v293
      %v396 = vunpack.c.l.b16 %v294
      %v397 = vunpack.c.l.b16 %v295
      %v398 = vunpack.c.l.b16 %v296
      %v399 = vunpack.c.l.b16 %v297
      %v400 = vunpack.c.l.b16 %v298
      %v401 = vunpack.c.l.b16 %v299
      %v402 = vunpack.c.l.b16 %v300
      %v403 = vpack.c.b16 %v356, %v355
      %v404 = vpack.c.b16 %v357, %v357
      %v405 = vpack.c.b16 %v359, %v358
      %v406 = vpack.c.b16 %v360, %v360
      %v407 = vpack.c.b16 %v362, %v361
      %v408 = vpack.c.b16 %v363, %v363
      %v409 = vpack.c.b16 %v365, %v364
      %v410 = vpack.c.b16 %v366, %v366
      %v411 = vpack.c.b16 %v368, %v367
      %v412 = vpack.c.b16 %v369, %v369
      %v413 = vpack.c.b16 %v371, %v370
      %v414 = vpack.c.b16 %v372, %v372
      %v415 = vpack.c.b16 %v374, %v373
      %v416 = vpack.c.b16 %v375, %v375
      %v417 = vpack.c.b16 %v377, %v376
      %v418 = vpack.c.b16 %v378, %v378
      %v419 = vpack.c.b16 %v380, %v379
      %v420 = vpack.c.b16 %v381, %v381
      %v421 = vpack.c.b16 %v383, %v382
      %v422 = vpack.c.b16 %v384, %v384
      %v423 = vpack.c.b16 %v386, %v385
      %v424 = vpack.c.b16 %v387, %v387
      %v425 = vpack.c.b16 %v389, %v388
      %v426 = vpack.c.b16 %v390, %v390
      %v427 = vpack.c.b16 %v392, %v391
      %v428 = vpack.c.b16 %v393, %v393
      %v429 = vpack.c.b16 %v395, %v394
      %v430 = vpack.c.b16 %v396, %v396
      %v431 = vpack.c.b16 %v398, %v397
      %v432 = vpack.c.b16 %v399, %v399
      %v433 = vpack.c.b16 %v401, %v400
      %v434 = vpack.c.b16 %v402, %v402
      %v438 = vunpack.c.l.b16 %v301
      %v439 = vunpack.c.l.b16 %v302
      %v440 = vunpack.c.l.b16 %v303
      %v441 = vpack.c.b16 %v439, %v438
      %v442 = vpack.c.b16 %v440, %v440
      %443 = vrot.lane.b32.xlu0 %v405, 32
      %v444 = vpop.permute.xlu0 %443
      %445 = vrot.lane.b32.xlu0 %v406, 32
      %v446 = vpop.permute.xlu0 %445
      %447 = vrot.lane.b32.xlu0 %v407, 32
      %v448 = vpop.permute.xlu0 %447
      %449 = vrot.lane.b32.xlu0 %v408, 32
      %v450 = vpop.permute.xlu0 %449
      %451 = vrot.lane.b32.xlu0 %v409, 32
      %v452 = vpop.permute.xlu0 %451
      %453 = vrot.lane.b32.xlu0 %v410, 32
      %v454 = vpop.permute.xlu0 %453
      %455 = vrot.lane.b32.xlu0 %v411, 32
      %v456 = vpop.permute.xlu0 %455
      %457 = vrot.lane.b32.xlu0 %v412, 32
      %v458 = vpop.permute.xlu0 %457
      %459 = vrot.lane.b32.xlu0 %v413, 32
      %v460 = vpop.permute.xlu0 %459
      %461 = vrot.lane.b32.xlu0 %v414, 32
      %v462 = vpop.permute.xlu0 %461
      %463 = vrot.lane.b32.xlu0 %v415, 32
      %v464 = vpop.permute.xlu0 %463
      %465 = vrot.lane.b32.xlu0 %v416, 32
      %v466 = vpop.permute.xlu0 %465
      %467 = vrot.lane.b32.xlu0 %v417, 32
      %v468 = vpop.permute.xlu0 %467
      %469 = vrot.lane.b32.xlu0 %v418, 32
      %v470 = vpop.permute.xlu0 %469
      %471 = vrot.lane.b32.xlu0 %v419, 32
      %v472 = vpop.permute.xlu0 %471
      %473 = vrot.lane.b32.xlu0 %v420, 32
      %v474 = vpop.permute.xlu0 %473
      %475 = vrot.lane.b32.xlu0 %v421, 32
      %v476 = vpop.permute.xlu0 %475
      %477 = vrot.lane.b32.xlu0 %v422, 32
      %v478 = vpop.permute.xlu0 %477
      %479 = vrot.lane.b32.xlu0 %v423, 32
      %v480 = vpop.permute.xlu0 %479
      %481 = vrot.lane.b32.xlu0 %v424, 32
      %v482 = vpop.permute.xlu0 %481
      %483 = vrot.lane.b32.xlu0 %v425, 32
      %v484 = vpop.permute.xlu0 %483
      %485 = vrot.lane.b32.xlu0 %v426, 32
      %v486 = vpop.permute.xlu0 %485
      %487 = vrot.lane.b32.xlu0 %v427, 32
      %v488 = vpop.permute.xlu0 %487
      %489 = vrot.lane.b32.xlu0 %v428, 32
      %v490 = vpop.permute.xlu0 %489
      %491 = vrot.lane.b32.xlu0 %v429, 32
      %v492 = vpop.permute.xlu0 %491
      %493 = vrot.lane.b32.xlu0 %v430, 32
      %v494 = vpop.permute.xlu0 %493
      %495 = vrot.lane.b32.xlu0 %v431, 32
      %v496 = vpop.permute.xlu0 %495
      %497 = vrot.lane.b32.xlu0 %v432, 32
      %v498 = vpop.permute.xlu0 %497
      %499 = vrot.lane.b32.xlu0 %v433, 32
      %v500 = vpop.permute.xlu0 %499
      %501 = vrot.lane.b32.xlu0 %v434, 32
      %v502 = vpop.permute.xlu0 %501
      %503 = vrot.lane.b32.xlu0 %v441, 32
      %v504 = vpop.permute.xlu0 %503
      %505 = vrot.lane.b32.xlu0 %v442, 32
      %v506 = vpop.permute.xlu0 %505
      %v510 = vunpack.c.l.b16 %v304
      %v511 = vunpack.c.l.b16 %v305
      %v512 = vunpack.c.l.b16 %v306
      %v513 = vpack.c.b16 %v511, %v510
      %v514 = vpack.c.b16 %v512, %v512
      %515 = vrot.lane.b32.xlu0 %v407, 64
      %v516 = vpop.permute.xlu0 %515
      %517 = vrot.lane.b32.xlu0 %v408, 64
      %v518 = vpop.permute.xlu0 %517
      %519 = vrot.lane.b32.xlu0 %v409, 64
      %v520 = vpop.permute.xlu0 %519
      %521 = vrot.lane.b32.xlu0 %v410, 64
      %v522 = vpop.permute.xlu0 %521
      %523 = vrot.lane.b32.xlu0 %v411, 64
      %v524 = vpop.permute.xlu0 %523
      %525 = vrot.lane.b32.xlu0 %v412, 64
      %v526 = vpop.permute.xlu0 %525
      %527 = vrot.lane.b32.xlu0 %v413, 64
      %v528 = vpop.permute.xlu0 %527
      %529 = vrot.lane.b32.xlu0 %v414, 64
      %v530 = vpop.permute.xlu0 %529
      %531 = vrot.lane.b32.xlu0 %v415, 64
      %v532 = vpop.permute.xlu0 %531
      %533 = vrot.lane.b32.xlu0 %v416, 64
      %v534 = vpop.permute.xlu0 %533
      %535 = vrot.lane.b32.xlu0 %v417, 64
      %v536 = vpop.permute.xlu0 %535
      %537 = vrot.lane.b32.xlu0 %v418, 64
      %v538 = vpop.permute.xlu0 %537
      %539 = vrot.lane.b32.xlu0 %v419, 64
      %v540 = vpop.permute.xlu0 %539
      %541 = vrot.lane.b32.xlu0 %v420, 64
      %v542 = vpop.permute.xlu0 %541
      %543 = vrot.lane.b32.xlu0 %v421, 64
      %v544 = vpop.permute.xlu0 %543
      %545 = vrot.lane.b32.xlu0 %v422, 64
      %v546 = vpop.permute.xlu0 %545
      %547 = vrot.lane.b32.xlu0 %v423, 64
      %v548 = vpop.permute.xlu0 %547
      %549 = vrot.lane.b32.xlu0 %v424, 64
      %v550 = vpop.permute.xlu0 %549
      %551 = vrot.lane.b32.xlu0 %v425, 64
      %v552 = vpop.permute.xlu0 %551
      %553 = vrot.lane.b32.xlu0 %v426, 64
      %v554 = vpop.permute.xlu0 %553
      %555 = vrot.lane.b32.xlu0 %v427, 64
      %v556 = vpop.permute.xlu0 %555
      %557 = vrot.lane.b32.xlu0 %v428, 64
      %v558 = vpop.permute.xlu0 %557
      %559 = vrot.lane.b32.xlu0 %v429, 64
      %v560 = vpop.permute.xlu0 %559
      %561 = vrot.lane.b32.xlu0 %v430, 64
      %v562 = vpop.permute.xlu0 %561
      %563 = vrot.lane.b32.xlu0 %v431, 64
      %v564 = vpop.permute.xlu0 %563
      %565 = vrot.lane.b32.xlu0 %v432, 64
      %v566 = vpop.permute.xlu0 %565
      %567 = vrot.lane.b32.xlu0 %v433, 64
      %v568 = vpop.permute.xlu0 %567
      %569 = vrot.lane.b32.xlu0 %v434, 64
      %v570 = vpop.permute.xlu0 %569
      %571 = vrot.lane.b32.xlu0 %v441, 64
      %v572 = vpop.permute.xlu0 %571
      %573 = vrot.lane.b32.xlu0 %v442, 64
      %v574 = vpop.permute.xlu0 %573
      %575 = vrot.lane.b32.xlu0 %v513, 64
      %v576 = vpop.permute.xlu0 %575
      %577 = vrot.lane.b32.xlu0 %v514, 64
      %v578 = vpop.permute.xlu0 %577
      %vm579 = vcmask 261120
      %v582 = vsel %vm579, %v403, %v444
      %v585 = vsel %vm579, %v404, %v446
      %v588 = vsel %vm579, %v405, %v448
      %v591 = vsel %vm579, %v406, %v450
      %v594 = vsel %vm579, %v407, %v452
      %v597 = vsel %vm579, %v408, %v454
      %v600 = vsel %vm579, %v409, %v456
      %v603 = vsel %vm579, %v410, %v458
      %v606 = vsel %vm579, %v411, %v460
      %v609 = vsel %vm579, %v412, %v462
      %v612 = vsel %vm579, %v413, %v464
      %v615 = vsel %vm579, %v414, %v466
      %v618 = vsel %vm579, %v415, %v468
      %v621 = vsel %vm579, %v416, %v470
      %v624 = vsel %vm579, %v417, %v472
      %v627 = vsel %vm579, %v418, %v474
      %v630 = vsel %vm579, %v419, %v476
      %v633 = vsel %vm579, %v420, %v478
      %v636 = vsel %vm579, %v421, %v480
      %v639 = vsel %vm579, %v422, %v482
      %v642 = vsel %vm579, %v423, %v484
      %v645 = vsel %vm579, %v424, %v486
      %v648 = vsel %vm579, %v425, %v488
      %v651 = vsel %vm579, %v426, %v490
      %v654 = vsel %vm579, %v427, %v492
      %v657 = vsel %vm579, %v428, %v494
      %v660 = vsel %vm579, %v429, %v496
      %v663 = vsel %vm579, %v430, %v498
      %v666 = vsel %vm579, %v431, %v500
      %v669 = vsel %vm579, %v432, %v502
      %v672 = vsel %vm579, %v433, %v504
      %v675 = vsel %vm579, %v434, %v506
      %vm676 = vcmask 523264
      %v678 = vsel %vm676, %v582, %v516
      %v680 = vsel %vm676, %v585, %v518
      %v682 = vsel %vm676, %v588, %v520
      %v684 = vsel %vm676, %v591, %v522
      %v686 = vsel %vm676, %v594, %v524
      %v688 = vsel %vm676, %v597, %v526
      %v690 = vsel %vm676, %v600, %v528
      %v692 = vsel %vm676, %v603, %v530
      %v694 = vsel %vm676, %v606, %v532
      %v696 = vsel %vm676, %v609, %v534
      %v698 = vsel %vm676, %v612, %v536
      %v700 = vsel %vm676, %v615, %v538
      %v702 = vsel %vm676, %v618, %v540
      %v704 = vsel %vm676, %v621, %v542
      %v706 = vsel %vm676, %v624, %v544
      %v708 = vsel %vm676, %v627, %v546
      %v710 = vsel %vm676, %v630, %v548
      %v712 = vsel %vm676, %v633, %v550
      %v714 = vsel %vm676, %v636, %v552
      %v716 = vsel %vm676, %v639, %v554
      %v718 = vsel %vm676, %v642, %v556
      %v720 = vsel %vm676, %v645, %v558
      %v722 = vsel %vm676, %v648, %v560
      %v724 = vsel %vm676, %v651, %v562
      %v726 = vsel %vm676, %v654, %v564
      %v728 = vsel %vm676, %v657, %v566
      %v730 = vsel %vm676, %v660, %v568
      %v732 = vsel %vm676, %v663, %v570
      %v734 = vsel %vm676, %v666, %v572
      %v736 = vsel %vm676, %v669, %v574
      %v738 = vsel %vm676, %v672, %v576
      %v740 = vsel %vm676, %v675, %v578
      %v741 = vld [vmem:[%s1] sm:$0xff]
      %v742 = vld [vmem:[%s1 + $0x8] sm:$0xff]
      %v743 = vld [vmem:[%s1 + $0x10] sm:$0xff]
      %v744 = vld [vmem:[%s1 + $0x18] sm:$0xff]
      %v745 = vld [vmem:[%s1 + $0x20] sm:$0xff]
      %v746 = vld [vmem:[%s1 + $0x28] sm:$0xff]
      %v747 = vld [vmem:[%s1 + $0x30] sm:$0xff]
      %v748 = vld [vmem:[%s1 + $0x38] sm:$0xff]
      %v749 = vld [vmem:[%s1 + $0x40] sm:$0xff]
      %v750 = vld [vmem:[%s1 + $0x48] sm:$0xff]
      %v751 = vld [vmem:[%s1 + $0x50] sm:$0xff]
      %v752 = vld [vmem:[%s1 + $0x58] sm:$0xff]
      %vm753 = vsmask.f32 7424
      %v754 = vshrl.u32 %v678, 16
      %v756 = vshll.u32 %v678, 16
      %v758 = vrot.slane %v756, 1
      %v759 = vor.u32 %v754, %v758
      %v760 = vshll.u32 %v680, 16
      %v762 = vrot.slane %v760, 1
      %v763 = vsel %vm753, %v759, %v762
      %v764 = vshrl.u32 %v682, 16
      %v766 = vshll.u32 %v682, 16
      %v768 = vrot.slane %v766, 1
      %v769 = vor.u32 %v764, %v768
      %v770 = vshll.u32 %v684, 16
      %v772 = vrot.slane %v770, 1
      %v773 = vsel %vm753, %v769, %v772
      %v774 = vshrl.u32 %v686, 16
      %v776 = vshll.u32 %v686, 16
      %v778 = vrot.slane %v776, 1
      %v779 = vor.u32 %v774, %v778
      %v780 = vshll.u32 %v688, 16
      %v782 = vrot.slane %v780, 1
      %v783 = vsel %vm753, %v779, %v782
      %v784 = vshrl.u32 %v690, 16
      %v786 = vshll.u32 %v690, 16
      %v788 = vrot.slane %v786, 1
      %v789 = vor.u32 %v784, %v788
      %v790 = vshll.u32 %v692, 16
      %v792 = vrot.slane %v790, 1
      %v793 = vsel %vm753, %v789, %v792
      %v794 = vshrl.u32 %v694, 16
      %v796 = vshll.u32 %v694, 16
      %v798 = vrot.slane %v796, 1
      %v799 = vor.u32 %v794, %v798
      %v800 = vshll.u32 %v696, 16
      %v802 = vrot.slane %v800, 1
      %v803 = vsel %vm753, %v799, %v802
      %v804 = vshrl.u32 %v698, 16
      %v806 = vshll.u32 %v698, 16
      %v808 = vrot.slane %v806, 1
      %v809 = vor.u32 %v804, %v808
      %v810 = vshll.u32 %v700, 16
      %v812 = vrot.slane %v810, 1
      %v813 = vsel %vm753, %v809, %v812
      %v814 = vshrl.u32 %v702, 16
      %v816 = vshll.u32 %v702, 16
      %v818 = vrot.slane %v816, 1
      %v819 = vor.u32 %v814, %v818
      %v820 = vshll.u32 %v704, 16
      %v822 = vrot.slane %v820, 1
      %v823 = vsel %vm753, %v819, %v822
      %v824 = vshrl.u32 %v706, 16
      %v826 = vshll.u32 %v706, 16
      %v828 = vrot.slane %v826, 1
      %v829 = vor.u32 %v824, %v828
      %v830 = vshll.u32 %v708, 16
      %v832 = vrot.slane %v830, 1
      %v833 = vsel %vm753, %v829, %v832
      %v834 = vshrl.u32 %v710, 16
      %v836 = vshll.u32 %v710, 16
      %v838 = vrot.slane %v836, 1
      %v839 = vor.u32 %v834, %v838
      %v840 = vshll.u32 %v712, 16
      %v842 = vrot.slane %v840, 1
      %v843 = vsel %vm753, %v839, %v842
      %v844 = vshrl.u32 %v714, 16
      %v846 = vshll.u32 %v714, 16
      %v848 = vrot.slane %v846, 1
      %v849 = vor.u32 %v844, %v848
      %v850 = vshll.u32 %v716, 16
      %v852 = vrot.slane %v850, 1
      %v853 = vsel %vm753, %v849, %v852
      %v854 = vshrl.u32 %v718, 16
      %v856 = vshll.u32 %v718, 16
      %v858 = vrot.slane %v856, 1
      %v859 = vor.u32 %v854, %v858
      %v860 = vshll.u32 %v720, 16
      %v862 = vrot.slane %v860, 1
      %v863 = vsel %vm753, %v859, %v862
      %v864 = vshrl.u32 %v722, 16
      %v866 = vshll.u32 %v722, 16
      %v868 = vrot.slane %v866, 1
      %v869 = vor.u32 %v864, %v868
      %v870 = vshll.u32 %v724, 16
      %v872 = vrot.slane %v870, 1
      %v873 = vsel %vm753, %v869, %v872
      %v874 = vshrl.u32 %v726, 16
      %v876 = vshll.u32 %v726, 16
      %v878 = vrot.slane %v876, 1
      %v879 = vor.u32 %v874, %v878
      %v880 = vshll.u32 %v728, 16
      %v882 = vrot.slane %v880, 1
      %v883 = vsel %vm753, %v879, %v882
      %v884 = vshrl.u32 %v730, 16
      %v886 = vshll.u32 %v730, 16
      %v888 = vrot.slane %v886, 1
      %v889 = vor.u32 %v884, %v888
      %v890 = vshll.u32 %v732, 16
      %v892 = vrot.slane %v890, 1
      %v893 = vsel %vm753, %v889, %v892
      %v894 = vshrl.u32 %v734, 16
      %v896 = vshll.u32 %v734, 16
      %v898 = vrot.slane %v896, 1
      %v899 = vor.u32 %v894, %v898
      %v900 = vshll.u32 %v736, 16
      %v902 = vrot.slane %v900, 1
      %v903 = vsel %vm753, %v899, %v902
      %v904 = vshrl.u32 %v738, 16
      %v906 = vshll.u32 %v738, 16
      %v908 = vrot.slane %v906, 1
      %v909 = vor.u32 %v904, %v908
      %v910 = vshll.u32 %v740, 16
      %v912 = vrot.slane %v910, 1
      %v913 = vsel %vm753, %v909, %v912
      %s914 = scalar_lea.vmem %s1, 96
      %v915 = vld [vmem:[%s914] sm:$0xff]
      %v916 = vld [vmem:[%s914 + $0x8] sm:$0xff]
      %v917 = vld [vmem:[%s914 + $0x10] sm:$0xff]
      %v918 = vld [vmem:[%s914 + $0x18] sm:$0xff]
      %v919 = vld [vmem:[%s914 + $0x20] sm:$0xff]
      %v920 = vld [vmem:[%s914 + $0x28] sm:$0xff]
      %v921 = vld [vmem:[%s914 + $0x30] sm:$0xff]
      %v922 = vld [vmem:[%s914 + $0x38] sm:$0xff]
      %v923 = vld [vmem:[%s914 + $0x40] sm:$0xff]
      %v924 = vld [vmem:[%s914 + $0x48] sm:$0xff]
      %v925 = vld [vmem:[%s914 + $0x50] sm:$0xff]
      %v926 = vld [vmem:[%s914 + $0x58] sm:$0xff]
      %v939 = vunpack.c.l.b16 %v915
      %v940 = vunpack.c.h.b16 %v915
      %v941 = vunpack.c.l.b16 %v916
      %v942 = vunpack.c.h.b16 %v916
      %v943 = vunpack.c.l.b16 %v917
      %v944 = vunpack.c.h.b16 %v917
      %v945 = vunpack.c.l.b16 %v918
      %v946 = vunpack.c.h.b16 %v918
      %v947 = vunpack.c.l.b16 %v919
      %v948 = vunpack.c.h.b16 %v919
      %v949 = vunpack.c.l.b16 %v920
      %v950 = vunpack.c.h.b16 %v920
      %v951 = vunpack.c.l.b16 %v921
      %v952 = vunpack.c.h.b16 %v921
      %v953 = vunpack.c.l.b16 %v922
      %v954 = vunpack.c.h.b16 %v922
      %v955 = vunpack.c.l.b16 %v923
      %v956 = vunpack.c.h.b16 %v923
      %v957 = vunpack.c.l.b16 %v924
      %v958 = vunpack.c.h.b16 %v924
      %v959 = vunpack.c.l.b16 %v925
      %v960 = vunpack.c.h.b16 %v925
      %v961 = vunpack.c.l.b16 %v926
      %v962 = vunpack.c.h.b16 %v926
      %v963 = vpack.c.b16 %v941, %v939
      %v964 = vpack.c.b16 %v942, %v940
      %v965 = vpack.c.b16 %v945, %v943
      %v966 = vpack.c.b16 %v946, %v944
      %v967 = vpack.c.b16 %v949, %v947
      %v968 = vpack.c.b16 %v950, %v948
      %v969 = vpack.c.b16 %v953, %v951
      %v970 = vpack.c.b16 %v954, %v952
      %v971 = vpack.c.b16 %v957, %v955
      %v972 = vpack.c.b16 %v958, %v956
      %v973 = vpack.c.b16 %v961, %v959
      %v974 = vpack.c.b16 %v962, %v960
      %vm987 = vcmask 785408
      %v989 = vsel %vm987, %v763, 0
      %v992 = vsel %vm987, %v773, 0
      %v995 = vsel %vm987, %v783, 0
      %v998 = vsel %vm987, %v793, 0
      %v1001 = vsel %vm987, %v803, 0
      %v1004 = vsel %vm987, %v813, 0
      %v1007 = vsel %vm987, %v823, 0
      %v1010 = vsel %vm987, %v833, 0
      %v1013 = vsel %vm987, %v843, 0
      %v1016 = vsel %vm987, %v853, 0
      %v1019 = vsel %vm987, %v863, 0
      %v1022 = vsel %vm987, %v873, 0
      %v1025 = vsel %vm987, %v883, 0
      %v1028 = vsel %vm987, %v893, 0
      %v1031 = vsel %vm987, %v903, 0
      %v1034 = vsel %vm987, %v913, 0
      %1036 = vmatprep.subr.bf16.mxu0 %v964
      %1037 = vmatpush1.bf16.msra.mxu0 %v963
      %1038 = vmatprep.subr.bf16.mxu0 %v966
      %1039 = vmatpush1.bf16.msra.mxu0 %v965
      %1040 = vmatprep.subr.bf16.mxu0 %v968
      %1041 = vmatpush1.bf16.msra.mxu0 %v967
      %1042 = vmatprep.subr.bf16.mxu0 %v970
      %1043 = vmatpush1.bf16.msra.mxu0 %v969
      %1044 = vmatprep.subr.bf16.mxu0 %v972
      %1045 = vmatpush1.bf16.msra.mxu0 %v971
      %1046 = vmatprep.subr.bf16.mxu0 %v974
      %1047 = vmatpush1.bf16.msra.mxu0 %v973
      %1048 = vmatprep.subr.bf16.mxu0 0
      %1049 = vmatpush1.bf16.msra.mxu0 0
      %1050 = vmatprep.subr.bf16.mxu0 0
      %1051 = vmatpush1.bf16.msra.mxu0 0
      %1052 = vmatprep.subr.bf16.mxu0 0
      %1053 = vmatpush1.bf16.msra.mxu0 0
      %1054 = vmatprep.subr.bf16.mxu0 0
      %1055 = vmatpush1.bf16.msra.mxu0 0
      %1056 = vmatprep.subr.bf16.mxu0 0
      %1057 = vmatpush1.bf16.msra.mxu0 0
      %1058 = vmatprep.subr.bf16.mxu0 0
      %1059 = vmatpush1.bf16.msra.mxu0 0
      %1060 = vmatprep.subr.bf16.mxu0 0
      %1061 = vmatpush1.bf16.msra.mxu0 0
      %1062 = vmatprep.subr.bf16.mxu0 0
      %1063 = vmatpush1.bf16.msra.mxu0 0
      %1064 = vmatprep.subr.bf16.mxu0 0
      %1065 = vmatpush1.bf16.msra.mxu0 0
      %1066 = vmatprep.subr.bf16.mxu0 0
      %1067 = vmatpush1.bf16.msra.mxu0 0
      %1068 = vmatprep.mubr.bf16.mxu0 0
      %1069 = vmatmul.mubr.bf16.gmra.mrb[0].mxu0 %v989
      %v1070 = vpop.f32.mrb[0].mxu0
      %v1071 = vadd.f32 0.0, %v1070
      %v1072 = vpop.f32.mrb[0].mxu0
      %v1073 = vadd.f32 0.0, %v1072
      %v1074 = vpop.f32.mrb[0].mxu0
      %v1075 = vadd.f32 0.0, %v1074
      %v1076 = vpop.f32.mrb[0].mxu0
      %v1077 = vadd.f32 0.0, %v1076
      %1078 = vmatprep.mubr.bf16.mxu0 0
      %1079 = vmatmul.mubr.bf16.gmra.mrb[0].mxu0 %v992
      %v1080 = vpop.f32.mrb[0].mxu0
      %v1081 = vadd.f32 0.0, %v1080
      %v1082 = vpop.f32.mrb[0].mxu0
      %v1083 = vadd.f32 0.0, %v1082
      %v1084 = vpop.f32.mrb[0].mxu0
      %v1085 = vadd.f32 0.0, %v1084
      %v1086 = vpop.f32.mrb[0].mxu0
      %v1087 = vadd.f32 0.0, %v1086
      %1088 = vmatprep.mubr.bf16.mxu0 0
      %1089 = vmatmul.mubr.bf16.gmra.mrb[0].mxu0 %v995
      %v1090 = vpop.f32.mrb[0].mxu0
      %v1091 = vadd.f32 0.0, %v1090
      %v1092 = vpop.f32.mrb[0].mxu0
      %v1093 = vadd.f32 0.0, %v1092
      %v1094 = vpop.f32.mrb[0].mxu0
      %v1095 = vadd.f32 0.0, %v1094
      %v1096 = vpop.f32.mrb[0].mxu0
      %v1097 = vadd.f32 0.0, %v1096
      %1098 = vmatprep.mubr.bf16.mxu0 0
      %1099 = vmatmul.mubr.bf16.gmra.mrb[0].mxu0 %v998
      %v1100 = vpop.f32.mrb[0].mxu0
      %v1101 = vadd.f32 0.0, %v1100
      %v1102 = vpop.f32.mrb[0].mxu0
      %v1103 = vadd.f32 0.0, %v1102
      %v1104 = vpop.f32.mrb[0].mxu0
      %v1105 = vadd.f32 0.0, %v1104
      %v1106 = vpop.f32.mrb[0].mxu0
      %v1107 = vadd.f32 0.0, %v1106
      %1108 = vmatprep.mubr.bf16.mxu0 0
      %1109 = vmatmul.mubr.bf16.gmra.mrb[0].mxu0 %v1001
      %v1110 = vpop.f32.mrb[0].mxu0
      %v1111 = vadd.f32 0.0, %v1110
      %v1112 = vpop.f32.mrb[0].mxu0
      %v1113 = vadd.f32 0.0, %v1112
      %v1114 = vpop.f32.mrb[0].mxu0
      %v1115 = vadd.f32 0.0, %v1114
      %v1116 = vpop.f32.mrb[0].mxu0
      %v1117 = vadd.f32 0.0, %v1116
      %1118 = vmatprep.mubr.bf16.mxu0 0
      %1119 = vmatmul.mubr.bf16.gmra.mrb[0].mxu0 %v1004
      %v1120 = vpop.f32.mrb[0].mxu0
      %v1121 = vadd.f32 0.0, %v1120
      %v1122 = vpop.f32.mrb[0].mxu0
      %v1123 = vadd.f32 0.0, %v1122
      %v1124 = vpop.f32.mrb[0].mxu0
      %v1125 = vadd.f32 0.0, %v1124
      %v1126 = vpop.f32.mrb[0].mxu0
      %v1127 = vadd.f32 0.0, %v1126
      %1128 = vmatprep.mubr.bf16.mxu0 0
      %1129 = vmatmul.mubr.bf16.gmra.mrb[0].mxu0 %v1007
      %v1130 = vpop.f32.mrb[0].mxu0
      %v1131 = vadd.f32 0.0, %v1130
      %v1132 = vpop.f32.mrb[0].mxu0
      %v1133 = vadd.f32 0.0, %v1132
      %v1134 = vpop.f32.mrb[0].mxu0
      %v1135 = vadd.f32 0.0, %v1134
      %v1136 = vpop.f32.mrb[0].mxu0
      %v1137 = vadd.f32 0.0, %v1136
      %1138 = vmatprep.mubr.bf16.mxu0 0
      %1139 = vmatmul.mubr.bf16.gmra.mrb[0].mxu0 %v1010
      %v1140 = vpop.f32.mrb[0].mxu0
      %v1141 = vadd.f32 0.0, %v1140
      %v1142 = vpop.f32.mrb[0].mxu0
      %v1143 = vadd.f32 0.0, %v1142
      %v1144 = vpop.f32.mrb[0].mxu0
      %v1145 = vadd.f32 0.0, %v1144
      %v1146 = vpop.f32.mrb[0].mxu0
      %v1147 = vadd.f32 0.0, %v1146
      %1148 = vmatprep.mubr.bf16.mxu0 0
      %1149 = vmatmul.mubr.bf16.gmra.mrb[0].mxu0 %v1013
      %v1150 = vpop.f32.mrb[0].mxu0
      %v1151 = vadd.f32 0.0, %v1150
      %v1152 = vpop.f32.mrb[0].mxu0
      %v1153 = vadd.f32 0.0, %v1152
      %v1154 = vpop.f32.mrb[0].mxu0
      %v1155 = vadd.f32 0.0, %v1154
      %v1156 = vpop.f32.mrb[0].mxu0
      %v1157 = vadd.f32 0.0, %v1156
      %1158 = vmatprep.mubr.bf16.mxu0 0
      %1159 = vmatmul.mubr.bf16.gmra.mrb[0].mxu0 %v1016
      %v1160 = vpop.f32.mrb[0].mxu0
      %v1161 = vadd.f32 0.0, %v1160
      %v1162 = vpop.f32.mrb[0].mxu0
      %v1163 = vadd.f32 0.0, %v1162
      %v1164 = vpop.f32.mrb[0].mxu0
      %v1165 = vadd.f32 0.0, %v1164
      %v1166 = vpop.f32.mrb[0].mxu0
      %v1167 = vadd.f32 0.0, %v1166
      %1168 = vmatprep.mubr.bf16.mxu0 0
      %1169 = vmatmul.mubr.bf16.gmra.mrb[0].mxu0 %v1019
      %v1170 = vpop.f32.mrb[0].mxu0
      %v1171 = vadd.f32 0.0, %v1170
      %v1172 = vpop.f32.mrb[0].mxu0
      %v1173 = vadd.f32 0.0, %v1172
      %v1174 = vpop.f32.mrb[0].mxu0
      %v1175 = vadd.f32 0.0, %v1174
      %v1176 = vpop.f32.mrb[0].mxu0
      %v1177 = vadd.f32 0.0, %v1176
      %1178 = vmatprep.mubr.bf16.mxu0 0
      %1179 = vmatmul.mubr.bf16.gmra.mrb[0].mxu0 %v1022
      %v1180 = vpop.f32.mrb[0].mxu0
      %v1181 = vadd.f32 0.0, %v1180
      %v1182 = vpop.f32.mrb[0].mxu0
      %v1183 = vadd.f32 0.0, %v1182
      %v1184 = vpop.f32.mrb[0].mxu0
      %v1185 = vadd.f32 0.0, %v1184
      %v1186 = vpop.f32.mrb[0].mxu0
      %v1187 = vadd.f32 0.0, %v1186
      %1188 = vmatprep.mubr.bf16.mxu0 0
      %1189 = vmatmul.mubr.bf16.gmra.mrb[0].mxu0 %v1025
      %v1190 = vpop.f32.mrb[0].mxu0
      %v1191 = vadd.f32 0.0, %v1190
      %v1192 = vpop.f32.mrb[0].mxu0
      %v1193 = vadd.f32 0.0, %v1192
      %v1194 = vpop.f32.mrb[0].mxu0
      %v1195 = vadd.f32 0.0, %v1194
      %v1196 = vpop.f32.mrb[0].mxu0
      %v1197 = vadd.f32 0.0, %v1196
      %1198 = vmatprep.mubr.bf16.mxu0 0
      %1199 = vmatmul.mubr.bf16.gmra.mrb[0].mxu0 %v1028
      %v1200 = vpop.f32.mrb[0].mxu0
      %v1201 = vadd.f32 0.0, %v1200
      %v1202 = vpop.f32.mrb[0].mxu0
      %v1203 = vadd.f32 0.0, %v1202
      %v1204 = vpop.f32.mrb[0].mxu0
      %v1205 = vadd.f32 0.0, %v1204
      %v1206 = vpop.f32.mrb[0].mxu0
      %v1207 = vadd.f32 0.0, %v1206
      %1208 = vmatprep.mubr.bf16.mxu0 0
      %1209 = vmatmul.mubr.bf16.gmra.mrb[0].mxu0 %v1031
      %v1210 = vpop.f32.mrb[0].mxu0
      %v1211 = vadd.f32 0.0, %v1210
      %v1212 = vpop.f32.mrb[0].mxu0
      %v1213 = vadd.f32 0.0, %v1212
      %v1214 = vpop.f32.mrb[0].mxu0
      %v1215 = vadd.f32 0.0, %v1214
      %v1216 = vpop.f32.mrb[0].mxu0
      %v1217 = vadd.f32 0.0, %v1216
      %1218 = vmatprep.mubr.bf16.mxu0 0
      %1219 = vmatmul.mubr.bf16.gmra.mrb[0].mxu0 %v1034
      %v1220 = vpop.f32.mrb[0].mxu0
      %v1221 = vadd.f32 0.0, %v1220
      %v1222 = vpop.f32.mrb[0].mxu0
      %v1223 = vadd.f32 0.0, %v1222
      %v1224 = vpop.f32.mrb[0].mxu0
      %v1225 = vadd.f32 0.0, %v1224
      %v1226 = vpop.f32.mrb[0].mxu0
      %v1227 = vadd.f32 0.0, %v1226
      %1228 = vdwg.mxu0
      %v1241 = vunpack.c.l.b16 %v741
      %v1242 = vunpack.c.h.b16 %v741
      %v1243 = vunpack.c.l.b16 %v742
      %v1244 = vunpack.c.h.b16 %v742
      %v1245 = vunpack.c.l.b16 %v743
      %v1246 = vunpack.c.h.b16 %v743
      %v1247 = vunpack.c.l.b16 %v744
      %v1248 = vunpack.c.h.b16 %v744
      %v1249 = vunpack.c.l.b16 %v745
      %v1250 = vunpack.c.h.b16 %v745
      %v1251 = vunpack.c.l.b16 %v746
      %v1252 = vunpack.c.h.b16 %v746
      %v1253 = vunpack.c.l.b16 %v747
      %v1254 = vunpack.c.h.b16 %v747
      %v1255 = vunpack.c.l.b16 %v748
      %v1256 = vunpack.c.h.b16 %v748
      %v1257 = vunpack.c.l.b16 %v749
      %v1258 = vunpack.c.h.b16 %v749
      %v1259 = vunpack.c.l.b16 %v750
      %v1260 = vunpack.c.h.b16 %v750
      %v1261 = vunpack.c.l.b16 %v751
      %v1262 = vunpack.c.h.b16 %v751
      %v1263 = vunpack.c.l.b16 %v752
      %v1264 = vunpack.c.h.b16 %v752
      %v1265 = vpack.c.b16 %v1243, %v1241
      %v1266 = vpack.c.b16 %v1244, %v1242
      %v1267 = vpack.c.b16 %v1247, %v1245
      %v1268 = vpack.c.b16 %v1248, %v1246
      %v1269 = vpack.c.b16 %v1251, %v1249
      %v1270 = vpack.c.b16 %v1252, %v1250
      %v1271 = vpack.c.b16 %v1255, %v1253
      %v1272 = vpack.c.b16 %v1256, %v1254
      %v1273 = vpack.c.b16 %v1259, %v1257
      %v1274 = vpack.c.b16 %v1260, %v1258
      %v1275 = vpack.c.b16 %v1263, %v1261
      %v1276 = vpack.c.b16 %v1264, %v1262
      %v1289 = vsel %vm987, %v678, 0
      %v1291 = vsel %vm987, %v682, 0
      %v1293 = vsel %vm987, %v686, 0
      %v1295 = vsel %vm987, %v690, 0
      %v1297 = vsel %vm987, %v694, 0
      %v1299 = vsel %vm987, %v698, 0
      %v1301 = vsel %vm987, %v702, 0
      %v1303 = vsel %vm987, %v706, 0
      %v1305 = vsel %vm987, %v710, 0
      %v1307 = vsel %vm987, %v714, 0
      %v1309 = vsel %vm987, %v718, 0
      %v1311 = vsel %vm987, %v722, 0
      %v1313 = vsel %vm987, %v726, 0
      %v1315 = vsel %vm987, %v730, 0
      %v1317 = vsel %vm987, %v734, 0
      %v1319 = vsel %vm987, %v738, 0
      %1321 = vmatprep.subr.bf16.mxu0 %v1266
      %1322 = vmatpush1.bf16.msra.mxu0 %v1265
      %1323 = vmatprep.subr.bf16.mxu0 %v1268
      %1324 = vmatpush1.bf16.msra.mxu0 %v1267
      %1325 = vmatprep.subr.bf16.mxu0 %v1270
      %1326 = vmatpush1.bf16.msra.mxu0 %v1269
      %1327 = vmatprep.subr.bf16.mxu0 %v1272
      %1328 = vmatpush1.bf16.msra.mxu0 %v1271
      %1329 = vmatprep.subr.bf16.mxu0 %v1274
      %1330 = vmatpush1.bf16.msra.mxu0 %v1273
      %1331 = vmatprep.subr.bf16.mxu0 %v1276
      %1332 = vmatpush1.bf16.msra.mxu0 %v1275
      %1333 = vmatprep.subr.bf16.mxu0 0
      %1334 = vmatpush1.bf16.msra.mxu0 0
      %1335 = vmatprep.subr.bf16.mxu0 0
      %1336 = vmatpush1.bf16.msra.mxu0 0
      %1337 = vmatprep.subr.bf16.mxu0 0
      %1338 = vmatpush1.bf16.msra.mxu0 0
      %1339 = vmatprep.subr.bf16.mxu0 0
      %1340 = vmatpush1.bf16.msra.mxu0 0
      %1341 = vmatprep.subr.bf16.mxu0 0
      %1342 = vmatpush1.bf16.msra.mxu0 0
      %1343 = vmatprep.subr.bf16.mxu0 0
      %1344 = vmatpush1.bf16.msra.mxu0 0
      %1345 = vmatprep.subr.bf16.mxu0 0
      %1346 = vmatpush1.bf16.msra.mxu0 0
      %1347 = vmatprep.subr.bf16.mxu0 0
      %1348 = vmatpush1.bf16.msra.mxu0 0
      %1349 = vmatprep.subr.bf16.mxu0 0
      %1350 = vmatpush1.bf16.msra.mxu0 0
      %1351 = vmatprep.subr.bf16.mxu0 0
      %1352 = vmatpush1.bf16.msra.mxu0 0
      %1353 = vmatprep.mubr.bf16.mxu0 0
      %1354 = vmatmul.mubr.bf16.gmra.mrb[0].mxu0 %v1289
      %v1355 = vpop.f32.mrb[0].mxu0
      %v1356 = vadd.f32 %v1071, %v1355
      %v1357 = vpop.f32.mrb[0].mxu0
      %v1358 = vadd.f32 %v1073, %v1357
      %v1359 = vpop.f32.mrb[0].mxu0
      %v1360 = vadd.f32 %v1075, %v1359
      %v1361 = vpop.f32.mrb[0].mxu0
      %v1362 = vadd.f32 %v1077, %v1361
      %1363 = vmatprep.mubr.bf16.mxu0 0
      %1364 = vmatmul.mubr.bf16.gmra.mrb[0].mxu0 %v1291
      %v1365 = vpop.f32.mrb[0].mxu0
      %v1366 = vadd.f32 %v1081, %v1365
      %v1367 = vpop.f32.mrb[0].mxu0
      %v1368 = vadd.f32 %v1083, %v1367
      %v1369 = vpop.f32.mrb[0].mxu0
      %v1370 = vadd.f32 %v1085, %v1369
      %v1371 = vpop.f32.mrb[0].mxu0
      %v1372 = vadd.f32 %v1087, %v1371
      %1373 = vmatprep.mubr.bf16.mxu0 0
      %1374 = vmatmul.mubr.bf16.gmra.mrb[0].mxu0 %v1293
      %v1375 = vpop.f32.mrb[0].mxu0
      %v1376 = vadd.f32 %v1091, %v1375
      %v1377 = vpop.f32.mrb[0].mxu0
      %v1378 = vadd.f32 %v1093, %v1377
      %v1379 = vpop.f32.mrb[0].mxu0
      %v1380 = vadd.f32 %v1095, %v1379
      %v1381 = vpop.f32.mrb[0].mxu0
      %v1382 = vadd.f32 %v1097, %v1381
      %1383 = vmatprep.mubr.bf16.mxu0 0
      %1384 = vmatmul.mubr.bf16.gmra.mrb[0].mxu0 %v1295
      %v1385 = vpop.f32.mrb[0].mxu0
      %v1386 = vadd.f32 %v1101, %v1385
      %v1387 = vpop.f32.mrb[0].mxu0
      %v1388 = vadd.f32 %v1103, %v1387
      %v1389 = vpop.f32.mrb[0].mxu0
      %v1390 = vadd.f32 %v1105, %v1389
      %v1391 = vpop.f32.mrb[0].mxu0
      %v1392 = vadd.f32 %v1107, %v1391
      %1393 = vmatprep.mubr.bf16.mxu0 0
      %1394 = vmatmul.mubr.bf16.gmra.mrb[0].mxu0 %v1297
      %v1395 = vpop.f32.mrb[0].mxu0
      %v1396 = vadd.f32 %v1111, %v1395
      %v1397 = vpop.f32.mrb[0].mxu0
      %v1398 = vadd.f32 %v1113, %v1397
      %v1399 = vpop.f32.mrb[0].mxu0
      %v1400 = vadd.f32 %v1115, %v1399
      %v1401 = vpop.f32.mrb[0].mxu0
      %v1402 = vadd.f32 %v1117, %v1401
      %1403 = vmatprep.mubr.bf16.mxu0 0
      %1404 = vmatmul.mubr.bf16.gmra.mrb[0].mxu0 %v1299
      %v1405 = vpop.f32.mrb[0].mxu0
      %v1406 = vadd.f32 %v1121, %v1405
      %v1407 = vpop.f32.mrb[0].mxu0
      %v1408 = vadd.f32 %v1123, %v1407
      %v1409 = vpop.f32.mrb[0].mxu0
      %v1410 = vadd.f32 %v1125, %v1409
      %v1411 = vpop.f32.mrb[0].mxu0
      %v1412 = vadd.f32 %v1127, %v1411
      %1413 = vmatprep.mubr.bf16.mxu0 0
      %1414 = vmatmul.mubr.bf16.gmra.mrb[0].mxu0 %v1301
      %v1415 = vpop.f32.mrb[0].mxu0
      %v1416 = vadd.f32 %v1131, %v1415
      %v1417 = vpop.f32.mrb[0].mxu0
      %v1418 = vadd.f32 %v1133, %v1417
      %v1419 = vpop.f32.mrb[0].mxu0
      %v1420 = vadd.f32 %v1135, %v1419
      %v1421 = vpop.f32.mrb[0].mxu0
      %v1422 = vadd.f32 %v1137, %v1421
      %1423 = vmatprep.mubr.bf16.mxu0 0
      %1424 = vmatmul.mubr.bf16.gmra.mrb[0].mxu0 %v1303
      %v1425 = vpop.f32.mrb[0].mxu0
      %v1426 = vadd.f32 %v1141, %v1425
      %v1427 = vpop.f32.mrb[0].mxu0
      %v1428 = vadd.f32 %v1143, %v1427
      %v1429 = vpop.f32.mrb[0].mxu0
      %v1430 = vadd.f32 %v1145, %v1429
      %v1431 = vpop.f32.mrb[0].mxu0
      %v1432 = vadd.f32 %v1147, %v1431
      %1433 = vmatprep.mubr.bf16.mxu0 0
      %1434 = vmatmul.mubr.bf16.gmra.mrb[0].mxu0 %v1305
      %v1435 = vpop.f32.mrb[0].mxu0
      %v1436 = vadd.f32 %v1151, %v1435
      %v1437 = vpop.f32.mrb[0].mxu0
      %v1438 = vadd.f32 %v1153, %v1437
      %v1439 = vpop.f32.mrb[0].mxu0
      %v1440 = vadd.f32 %v1155, %v1439
      %v1441 = vpop.f32.mrb[0].mxu0
      %v1442 = vadd.f32 %v1157, %v1441
      %1443 = vmatprep.mubr.bf16.mxu0 0
      %1444 = vmatmul.mubr.bf16.gmra.mrb[0].mxu0 %v1307
      %v1445 = vpop.f32.mrb[0].mxu0
      %v1446 = vadd.f32 %v1161, %v1445
      %v1447 = vpop.f32.mrb[0].mxu0
      %v1448 = vadd.f32 %v1163, %v1447
      %v1449 = vpop.f32.mrb[0].mxu0
      %v1450 = vadd.f32 %v1165, %v1449
      %v1451 = vpop.f32.mrb[0].mxu0
      %v1452 = vadd.f32 %v1167, %v1451
      %1453 = vmatprep.mubr.bf16.mxu0 0
      %1454 = vmatmul.mubr.bf16.gmra.mrb[0].mxu0 %v1309
      %v1455 = vpop.f32.mrb[0].mxu0
      %v1456 = vadd.f32 %v1171, %v1455
      %v1457 = vpop.f32.mrb[0].mxu0
      %v1458 = vadd.f32 %v1173, %v1457
      %v1459 = vpop.f32.mrb[0].mxu0
      %v1460 = vadd.f32 %v1175, %v1459
      %v1461 = vpop.f32.mrb[0].mxu0
      %v1462 = vadd.f32 %v1177, %v1461
      %1463 = vmatprep.mubr.bf16.mxu0 0
      %1464 = vmatmul.mubr.bf16.gmra.mrb[0].mxu0 %v1311
      %v1465 = vpop.f32.mrb[0].mxu0
      %v1466 = vadd.f32 %v1181, %v1465
      %v1467 = vpop.f32.mrb[0].mxu0
      %v1468 = vadd.f32 %v1183, %v1467
      %v1469 = vpop.f32.mrb[0].mxu0
      %v1470 = vadd.f32 %v1185, %v1469
      %v1471 = vpop.f32.mrb[0].mxu0
      %v1472 = vadd.f32 %v1187, %v1471
      %1473 = vmatprep.mubr.bf16.mxu0 0
      %1474 = vmatmul.mubr.bf16.gmra.mrb[0].mxu0 %v1313
      %v1475 = vpop.f32.mrb[0].mxu0
      %v1476 = vadd.f32 %v1191, %v1475
      %v1477 = vpop.f32.mrb[0].mxu0
      %v1478 = vadd.f32 %v1193, %v1477
      %v1479 = vpop.f32.mrb[0].mxu0
      %v1480 = vadd.f32 %v1195, %v1479
      %v1481 = vpop.f32.mrb[0].mxu0
      %v1482 = vadd.f32 %v1197, %v1481
      %1483 = vmatprep.mubr.bf16.mxu0 0
      %1484 = vmatmul.mubr.bf16.gmra.mrb[0].mxu0 %v1315
      %v1485 = vpop.f32.mrb[0].mxu0
      %v1486 = vadd.f32 %v1201, %v1485
      %v1487 = vpop.f32.mrb[0].mxu0
      %v1488 = vadd.f32 %v1203, %v1487
      %v1489 = vpop.f32.mrb[0].mxu0
      %v1490 = vadd.f32 %v1205, %v1489
      %v1491 = vpop.f32.mrb[0].mxu0
      %v1492 = vadd.f32 %v1207, %v1491
      %1493 = vmatprep.mubr.bf16.mxu0 0
      %1494 = vmatmul.mubr.bf16.gmra.mrb[0].mxu0 %v1317
      %v1495 = vpop.f32.mrb[0].mxu0
      %v1496 = vadd.f32 %v1211, %v1495
      %v1497 = vpop.f32.mrb[0].mxu0
      %v1498 = vadd.f32 %v1213, %v1497
      %v1499 = vpop.f32.mrb[0].mxu0
      %v1500 = vadd.f32 %v1215, %v1499
      %v1501 = vpop.f32.mrb[0].mxu0
      %v1502 = vadd.f32 %v1217, %v1501
      %1503 = vmatprep.mubr.bf16.mxu0 0
      %1504 = vmatmul.mubr.bf16.gmra.mrb[0].mxu0 %v1319
      %v1505 = vpop.f32.mrb[0].mxu0
      %v1506 = vadd.f32 %v1221, %v1505
      %v1507 = vpop.f32.mrb[0].mxu0
      %v1508 = vadd.f32 %v1223, %v1507
      %v1509 = vpop.f32.mrb[0].mxu0
      %v1510 = vadd.f32 %v1225, %v1509
      %v1511 = vpop.f32.mrb[0].mxu0
      %v1512 = vadd.f32 %v1227, %v1511
      %1513 = vdwg.mxu0
      %vm1546 = vcmask 1046528
      %v1547 = vrot.slane %v678, 1
      %v1548 = vrot.slane %v680, 1
      %v1549 = vsel %vm1546, %v1547, %v1548
      %v1550 = vrot.slane %v682, 1
      %v1551 = vrot.slane %v684, 1
      %v1552 = vsel %vm1546, %v1550, %v1551
      %v1553 = vrot.slane %v686, 1
      %v1554 = vrot.slane %v688, 1
      %v1555 = vsel %vm1546, %v1553, %v1554
      %v1556 = vrot.slane %v690, 1
      %v1557 = vrot.slane %v692, 1
      %v1558 = vsel %vm1546, %v1556, %v1557
      %v1559 = vrot.slane %v694, 1
      %v1560 = vrot.slane %v696, 1
      %v1561 = vsel %vm1546, %v1559, %v1560
      %v1562 = vrot.slane %v698, 1
      %v1563 = vrot.slane %v700, 1
      %v1564 = vsel %vm1546, %v1562, %v1563
      %v1565 = vrot.slane %v702, 1
      %v1566 = vrot.slane %v704, 1
      %v1567 = vsel %vm1546, %v1565, %v1566
      %v1568 = vrot.slane %v706, 1
      %v1569 = vrot.slane %v708, 1
      %v1570 = vsel %vm1546, %v1568, %v1569
      %v1571 = vrot.slane %v710, 1
      %v1572 = vrot.slane %v712, 1
      %v1573 = vsel %vm1546, %v1571, %v1572
      %v1574 = vrot.slane %v714, 1
      %v1575 = vrot.slane %v716, 1
      %v1576 = vsel %vm1546, %v1574, %v1575
      %v1577 = vrot.slane %v718, 1
      %v1578 = vrot.slane %v720, 1
      %v1579 = vsel %vm1546, %v1577, %v1578
      %v1580 = vrot.slane %v722, 1
      %v1581 = vrot.slane %v724, 1
      %v1582 = vsel %vm1546, %v1580, %v1581
      %v1583 = vrot.slane %v726, 1
      %v1584 = vrot.slane %v728, 1
      %v1585 = vsel %vm1546, %v1583, %v1584
      %v1586 = vrot.slane %v730, 1
      %v1587 = vrot.slane %v732, 1
      %v1588 = vsel %vm1546, %v1586, %v1587
      %v1589 = vrot.slane %v734, 1
      %v1590 = vrot.slane %v736, 1
      %v1591 = vsel %vm1546, %v1589, %v1590
      %v1592 = vrot.slane %v738, 1
      %v1593 = vrot.slane %v740, 1
      %v1594 = vsel %vm1546, %v1592, %v1593
      %s1595 = scalar_lea.vmem %s1, 192
      %v1596 = vld [vmem:[%s1595] sm:$0xff]
      %v1597 = vld [vmem:[%s1595 + $0x8] sm:$0xff]
      %v1598 = vld [vmem:[%s1595 + $0x10] sm:$0xff]
      %v1599 = vld [vmem:[%s1595 + $0x18] sm:$0xff]
      %v1600 = vld [vmem:[%s1595 + $0x20] sm:$0xff]
      %v1601 = vld [vmem:[%s1595 + $0x28] sm:$0xff]
      %v1602 = vld [vmem:[%s1595 + $0x30] sm:$0xff]
      %v1603 = vld [vmem:[%s1595 + $0x38] sm:$0xff]
      %v1604 = vld [vmem:[%s1595 + $0x40] sm:$0xff]
      %v1605 = vld [vmem:[%s1595 + $0x48] sm:$0xff]
      %v1606 = vld [vmem:[%s1595 + $0x50] sm:$0xff]
      %v1607 = vld [vmem:[%s1595 + $0x58] sm:$0xff]
      %v1620 = vunpack.c.l.b16 %v1596
      %v1621 = vunpack.c.h.b16 %v1596
      %v1622 = vunpack.c.l.b16 %v1597
      %v1623 = vunpack.c.h.b16 %v1597
      %v1624 = vunpack.c.l.b16 %v1598
      %v1625 = vunpack.c.h.b16 %v1598
      %v1626 = vunpack.c.l.b16 %v1599
      %v1627 = vunpack.c.h.b16 %v1599
      %v1628 = vunpack.c.l.b16 %v1600
      %v1629 = vunpack.c.h.b16 %v1600
      %v1630 = vunpack.c.l.b16 %v1601
      %v1631 = vunpack.c.h.b16 %v1601
      %v1632 = vunpack.c.l.b16 %v1602
      %v1633 = vunpack.c.h.b16 %v1602
      %v1634 = vunpack.c.l.b16 %v1603
      %v1635 = vunpack.c.h.b16 %v1603
      %v1636 = vunpack.c.l.b16 %v1604
      %v1637 = vunpack.c.h.b16 %v1604
      %v1638 = vunpack.c.l.b16 %v1605
      %v1639 = vunpack.c.h.b16 %v1605
      %v1640 = vunpack.c.l.b16 %v1606
      %v1641 = vunpack.c.h.b16 %v1606
      %v1642 = vunpack.c.l.b16 %v1607
      %v1643 = vunpack.c.h.b16 %v1607
      %v1644 = vpack.c.b16 %v1622, %v1620
      %v1645 = vpack.c.b16 %v1623, %v1621
      %v1646 = vpack.c.b16 %v1626, %v1624
      %v1647 = vpack.c.b16 %v1627, %v1625
      %v1648 = vpack.c.b16 %v1630, %v1628
      %v1649 = vpack.c.b16 %v1631, %v1629
      %v1650 = vpack.c.b16 %v1634, %v1632
      %v1651 = vpack.c.b16 %v1635, %v1633
      %v1652 = vpack.c.b16 %v1638, %v1636
      %v1653 = vpack.c.b16 %v1639, %v1637
      %v1654 = vpack.c.b16 %v1642, %v1640
      %v1655 = vpack.c.b16 %v1643, %v1641
      %v1669 = vsel %vm987, %v1549, 0
      %v1672 = vsel %vm987, %v1552, 0
      %v1675 = vsel %vm987, %v1555, 0
      %v1678 = vsel %vm987, %v1558, 0
      %v1681 = vsel %vm987, %v1561, 0
      %v1684 = vsel %vm987, %v1564, 0
      %v1687 = vsel %vm987, %v1567, 0
      %v1690 = vsel %vm987, %v1570, 0
      %v1693 = vsel %vm987, %v1573, 0
      %v1696 = vsel %vm987, %v1576, 0
      %v1699 = vsel %vm987, %v1579, 0
      %v1702 = vsel %vm987, %v1582, 0
      %v1705 = vsel %vm987, %v1585, 0
      %v1708 = vsel %vm987, %v1588, 0
      %v1711 = vsel %vm987, %v1591, 0
      %v1714 = vsel %vm987, %v1594, 0
      %1716 = vmatprep.subr.bf16.mxu0 %v1645
      %1717 = vmatpush1.bf16.msra.mxu0 %v1644
      %1718 = vmatprep.subr.bf16.mxu0 %v1647
      %1719 = vmatpush1.bf16.msra.mxu0 %v1646
      %1720 = vmatprep.subr.bf16.mxu0 %v1649
      %1721 = vmatpush1.bf16.msra.mxu0 %v1648
      %1722 = vmatprep.subr.bf16.mxu0 %v1651
      %1723 = vmatpush1.bf16.msra.mxu0 %v1650
      %1724 = vmatprep.subr.bf16.mxu0 %v1653
      %1725 = vmatpush1.bf16.msra.mxu0 %v1652
      %1726 = vmatprep.subr.bf16.mxu0 %v1655
      %1727 = vmatpush1.bf16.msra.mxu0 %v1654
      %1728 = vmatprep.subr.bf16.mxu0 0
      %1729 = vmatpush1.bf16.msra.mxu0 0
      %1730 = vmatprep.subr.bf16.mxu0 0
      %1731 = vmatpush1.bf16.msra.mxu0 0
      %1732 = vmatprep.subr.bf16.mxu0 0
      %1733 = vmatpush1.bf16.msra.mxu0 0
      %1734 = vmatprep.subr.bf16.mxu0 0
      %1735 = vmatpush1.bf16.msra.mxu0 0
      %1736 = vmatprep.subr.bf16.mxu0 0
      %1737 = vmatpush1.bf16.msra.mxu0 0
      %1738 = vmatprep.subr.bf16.mxu0 0
      %1739 = vmatpush1.bf16.msra.mxu0 0
      %1740 = vmatprep.subr.bf16.mxu0 0
      %1741 = vmatpush1.bf16.msra.mxu0 0
      %1742 = vmatprep.subr.bf16.mxu0 0
      %1743 = vmatpush1.bf16.msra.mxu0 0
      %1744 = vmatprep.subr.bf16.mxu0 0
      %1745 = vmatpush1.bf16.msra.mxu0 0
      %1746 = vmatprep.subr.bf16.mxu0 0
      %1747 = vmatpush1.bf16.msra.mxu0 0
      %1748 = vmatprep.mubr.bf16.mxu0 0
      %1749 = vmatmul.mubr.bf16.gmra.mrb[0].mxu0 %v1669
      %v1750 = vpop.f32.mrb[0].mxu0
      %v1751 = vadd.f32 0.0, %v1750
      %v1752 = vpop.f32.mrb[0].mxu0
      %v1753 = vadd.f32 0.0, %v1752
      %v1754 = vpop.f32.mrb[0].mxu0
      %v1755 = vadd.f32 0.0, %v1754
      %v1756 = vpop.f32.mrb[0].mxu0
      %v1757 = vadd.f32 0.0, %v1756
      %1758 = vmatprep.mubr.bf16.mxu0 0
      %1759 = vmatmul.mubr.bf16.gmra.mrb[0].mxu0 %v1672
      %v1760 = vpop.f32.mrb[0].mxu0
      %v1761 = vadd.f32 0.0, %v1760
      %v1762 = vpop.f32.mrb[0].mxu0
      %v1763 = vadd.f32 0.0, %v1762
      %v1764 = vpop.f32.mrb[0].mxu0
      %v1765 = vadd.f32 0.0, %v1764
      %v1766 = vpop.f32.mrb[0].mxu0
      %v1767 = vadd.f32 0.0, %v1766
      %1768 = vmatprep.mubr.bf16.mxu0 0
      %1769 = vmatmul.mubr.bf16.gmra.mrb[0].mxu0 %v1675
      %v1770 = vpop.f32.mrb[0].mxu0
      %v1771 = vadd.f32 0.0, %v1770
      %v1772 = vpop.f32.mrb[0].mxu0
      %v1773 = vadd.f32 0.0, %v1772
      %v1774 = vpop.f32.mrb[0].mxu0
      %v1775 = vadd.f32 0.0, %v1774
      %v1776 = vpop.f32.mrb[0].mxu0
      %v1777 = vadd.f32 0.0, %v1776
      %1778 = vmatprep.mubr.bf16.mxu0 0
      %1779 = vmatmul.mubr.bf16.gmra.mrb[0].mxu0 %v1678
      %v1780 = vpop.f32.mrb[0].mxu0
      %v1781 = vadd.f32 0.0, %v1780
      %v1782 = vpop.f32.mrb[0].mxu0
      %v1783 = vadd.f32 0.0, %v1782
      %v1784 = vpop.f32.mrb[0].mxu0
      %v1785 = vadd.f32 0.0, %v1784
      %v1786 = vpop.f32.mrb[0].mxu0
      %v1787 = vadd.f32 0.0, %v1786
      %1788 = vmatprep.mubr.bf16.mxu0 0
      %1789 = vmatmul.mubr.bf16.gmra.mrb[0].mxu0 %v1681
      %v1790 = vpop.f32.mrb[0].mxu0
      %v1791 = vadd.f32 0.0, %v1790
      %v1792 = vpop.f32.mrb[0].mxu0
      %v1793 = vadd.f32 0.0, %v1792
      %v1794 = vpop.f32.mrb[0].mxu0
      %v1795 = vadd.f32 0.0, %v1794
      %v1796 = vpop.f32.mrb[0].mxu0
      %v1797 = vadd.f32 0.0, %v1796
      %1798 = vmatprep.mubr.bf16.mxu0 0
      %1799 = vmatmul.mubr.bf16.gmra.mrb[0].mxu0 %v1684
      %v1800 = vpop.f32.mrb[0].mxu0
      %v1801 = vadd.f32 0.0, %v1800
      %v1802 = vpop.f32.mrb[0].mxu0
      %v1803 = vadd.f32 0.0, %v1802
      %v1804 = vpop.f32.mrb[0].mxu0
      %v1805 = vadd.f32 0.0, %v1804
      %v1806 = vpop.f32.mrb[0].mxu0
      %v1807 = vadd.f32 0.0, %v1806
      %1808 = vmatprep.mubr.bf16.mxu0 0
      %1809 = vmatmul.mubr.bf16.gmra.mrb[0].mxu0 %v1687
      %v1810 = vpop.f32.mrb[0].mxu0
      %v1811 = vadd.f32 0.0, %v1810
      %v1812 = vpop.f32.mrb[0].mxu0
      %v1813 = vadd.f32 0.0, %v1812
      %v1814 = vpop.f32.mrb[0].mxu0
      %v1815 = vadd.f32 0.0, %v1814
      %v1816 = vpop.f32.mrb[0].mxu0
      %v1817 = vadd.f32 0.0, %v1816
      %1818 = vmatprep.mubr.bf16.mxu0 0
      %1819 = vmatmul.mubr.bf16.gmra.mrb[0].mxu0 %v1690
      %v1820 = vpop.f32.mrb[0].mxu0
      %v1821 = vadd.f32 0.0, %v1820
      %v1822 = vpop.f32.mrb[0].mxu0
      %v1823 = vadd.f32 0.0, %v1822
      %v1824 = vpop.f32.mrb[0].mxu0
      %v1825 = vadd.f32 0.0, %v1824
      %v1826 = vpop.f32.mrb[0].mxu0
      %v1827 = vadd.f32 0.0, %v1826
      %1828 = vmatprep.mubr.bf16.mxu0 0
      %1829 = vmatmul.mubr.bf16.gmra.mrb[0].mxu0 %v1693
      %v1830 = vpop.f32.mrb[0].mxu0
      %v1831 = vadd.f32 0.0, %v1830
      %v1832 = vpop.f32.mrb[0].mxu0
      %v1833 = vadd.f32 0.0, %v1832
      %v1834 = vpop.f32.mrb[0].mxu0
      %v1835 = vadd.f32 0.0, %v1834
      %v1836 = vpop.f32.mrb[0].mxu0
      %v1837 = vadd.f32 0.0, %v1836
      %1838 = vmatprep.mubr.bf16.mxu0 0
      %1839 = vmatmul.mubr.bf16.gmra.mrb[0].mxu0 %v1696
      %v1840 = vpop.f32.mrb[0].mxu0
      %v1841 = vadd.f32 0.0, %v1840
      %v1842 = vpop.f32.mrb[0].mxu0
      %v1843 = vadd.f32 0.0, %v1842
      %v1844 = vpop.f32.mrb[0].mxu0
      %v1845 = vadd.f32 0.0, %v1844
      %v1846 = vpop.f32.mrb[0].mxu0
      %v1847 = vadd.f32 0.0, %v1846
      %1848 = vmatprep.mubr.bf16.mxu0 0
      %1849 = vmatmul.mubr.bf16.gmra.mrb[0].mxu0 %v1699
      %v1850 = vpop.f32.mrb[0].mxu0
      %v1851 = vadd.f32 0.0, %v1850
      %v1852 = vpop.f32.mrb[0].mxu0
      %v1853 = vadd.f32 0.0, %v1852
      %v1854 = vpop.f32.mrb[0].mxu0
      %v1855 = vadd.f32 0.0, %v1854
      %v1856 = vpop.f32.mrb[0].mxu0
      %v1857 = vadd.f32 0.0, %v1856
      %1858 = vmatprep.mubr.bf16.mxu0 0
      %1859 = vmatmul.mubr.bf16.gmra.mrb[0].mxu0 %v1702
      %v1860 = vpop.f32.mrb[0].mxu0
      %v1861 = vadd.f32 0.0, %v1860
      %v1862 = vpop.f32.mrb[0].mxu0
      %v1863 = vadd.f32 0.0, %v1862
      %v1864 = vpop.f32.mrb[0].mxu0
      %v1865 = vadd.f32 0.0, %v1864
      %v1866 = vpop.f32.mrb[0].mxu0
      %v1867 = vadd.f32 0.0, %v1866
      %1868 = vmatprep.mubr.bf16.mxu0 0
      %1869 = vmatmul.mubr.bf16.gmra.mrb[0].mxu0 %v1705
      %v1870 = vpop.f32.mrb[0].mxu0
      %v1871 = vadd.f32 0.0, %v1870
      %v1872 = vpop.f32.mrb[0].mxu0
      %v1873 = vadd.f32 0.0, %v1872
      %v1874 = vpop.f32.mrb[0].mxu0
      %v1875 = vadd.f32 0.0, %v1874
      %v1876 = vpop.f32.mrb[0].mxu0
      %v1877 = vadd.f32 0.0, %v1876
      %1878 = vmatprep.mubr.bf16.mxu0 0
      %1879 = vmatmul.mubr.bf16.gmra.mrb[0].mxu0 %v1708
      %v1880 = vpop.f32.mrb[0].mxu0
      %v1881 = vadd.f32 0.0, %v1880
      %v1882 = vpop.f32.mrb[0].mxu0
      %v1883 = vadd.f32 0.0, %v1882
      %v1884 = vpop.f32.mrb[0].mxu0
      %v1885 = vadd.f32 0.0, %v1884
      %v1886 = vpop.f32.mrb[0].mxu0
      %v1887 = vadd.f32 0.0, %v1886
      %1888 = vmatprep.mubr.bf16.mxu0 0
      %1889 = vmatmul.mubr.bf16.gmra.mrb[0].mxu0 %v1711
      %v1890 = vpop.f32.mrb[0].mxu0
      %v1891 = vadd.f32 0.0, %v1890
      %v1892 = vpop.f32.mrb[0].mxu0
      %v1893 = vadd.f32 0.0, %v1892
      %v1894 = vpop.f32.mrb[0].mxu0
      %v1895 = vadd.f32 0.0, %v1894
      %v1896 = vpop.f32.mrb[0].mxu0
      %v1897 = vadd.f32 0.0, %v1896
      %1898 = vmatprep.mubr.bf16.mxu0 0
      %1899 = vmatmul.mubr.bf16.gmra.mrb[0].mxu0 %v1714
      %v1900 = vpop.f32.mrb[0].mxu0
      %v1901 = vadd.f32 0.0, %v1900
      %v1902 = vpop.f32.mrb[0].mxu0
      %v1903 = vadd.f32 0.0, %v1902
      %v1904 = vpop.f32.mrb[0].mxu0
      %v1905 = vadd.f32 0.0, %v1904
      %v1906 = vpop.f32.mrb[0].mxu0
      %v1907 = vadd.f32 0.0, %v1906
      %1908 = vdwg.mxu0
      %v1909 = vadd.f32 %v1356, %v1751
      %v1910 = vadd.f32 %v1358, %v1753
      %v1911 = vadd.f32 %v1360, %v1755
      %v1912 = vadd.f32 %v1362, %v1757
      %v1913 = vadd.f32 %v1366, %v1761
      %v1914 = vadd.f32 %v1368, %v1763
      %v1915 = vadd.f32 %v1370, %v1765
      %v1916 = vadd.f32 %v1372, %v1767
      %v1917 = vadd.f32 %v1376, %v1771
      %v1918 = vadd.f32 %v1378, %v1773
      %v1919 = vadd.f32 %v1380, %v1775
      %v1920 = vadd.f32 %v1382, %v1777
      %v1921 = vadd.f32 %v1386, %v1781
      %v1922 = vadd.f32 %v1388, %v1783
      %v1923 = vadd.f32 %v1390, %v1785
      %v1924 = vadd.f32 %v1392, %v1787
      %v1925 = vadd.f32 %v1396, %v1791
      %v1926 = vadd.f32 %v1398, %v1793
      %v1927 = vadd.f32 %v1400, %v1795
      %v1928 = vadd.f32 %v1402, %v1797
      %v1929 = vadd.f32 %v1406, %v1801
      %v1930 = vadd.f32 %v1408, %v1803
      %v1931 = vadd.f32 %v1410, %v1805
      %v1932 = vadd.f32 %v1412, %v1807
      %v1933 = vadd.f32 %v1416, %v1811
      %v1934 = vadd.f32 %v1418, %v1813
      %v1935 = vadd.f32 %v1420, %v1815
      %v1936 = vadd.f32 %v1422, %v1817
      %v1937 = vadd.f32 %v1426, %v1821
      %v1938 = vadd.f32 %v1428, %v1823
      %v1939 = vadd.f32 %v1430, %v1825
      %v1940 = vadd.f32 %v1432, %v1827
      %v1941 = vadd.f32 %v1436, %v1831
      %v1942 = vadd.f32 %v1438, %v1833
      %v1943 = vadd.f32 %v1440, %v1835
      %v1944 = vadd.f32 %v1442, %v1837
      %v1945 = vadd.f32 %v1446, %v1841
      %v1946 = vadd.f32 %v1448, %v1843
      %v1947 = vadd.f32 %v1450, %v1845
      %v1948 = vadd.f32 %v1452, %v1847
      %v1949 = vadd.f32 %v1456, %v1851
      %v1950 = vadd.f32 %v1458, %v1853
      %v1951 = vadd.f32 %v1460, %v1855
      %v1952 = vadd.f32 %v1462, %v1857
      %v1953 = vadd.f32 %v1466, %v1861
      %v1954 = vadd.f32 %v1468, %v1863
      %v1955 = vadd.f32 %v1470, %v1865
      %v1956 = vadd.f32 %v1472, %v1867
      %v1957 = vadd.f32 %v1476, %v1871
      %v1958 = vadd.f32 %v1478, %v1873
      %v1959 = vadd.f32 %v1480, %v1875
      %v1960 = vadd.f32 %v1482, %v1877
      %v1961 = vadd.f32 %v1486, %v1881
      %v1962 = vadd.f32 %v1488, %v1883
      %v1963 = vadd.f32 %v1490, %v1885
      %v1964 = vadd.f32 %v1492, %v1887
      %v1965 = vadd.f32 %v1496, %v1891
      %v1966 = vadd.f32 %v1498, %v1893
      %v1967 = vadd.f32 %v1500, %v1895
      %v1968 = vadd.f32 %v1502, %v1897
      %v1969 = vadd.f32 %v1506, %v1901
      %v1970 = vadd.f32 %v1508, %v1903
      %v1971 = vadd.f32 %v1510, %v1905
      %v1972 = vadd.f32 %v1512, %v1907
      %v1973 = vld [vmem:[%s2] sm:$0x3]
      %v1975 = vlaneseq
      %v1976 = vshrl.u32 %v1975, 7
      %v1977 = vsub.s32 0, %v1976
      %v1978 = vrot.slane %v1973, %v1977
      %v1979 = vlaneseq
      %v1980 = vshrl.u32 %v1979, 7
      %v1981 = vsub.s32 1, %v1980
      %v1982 = vrot.slane %v1973, %v1981
      %v1985 = vadd.f32 %v1909, %v1978
      %v1986 = vadd.f32 %v1910, %v1982
      %v1987 = vadd.f32 %v1911, %v1978
      %v1988 = vadd.f32 %v1912, %v1982
      %v1989 = vadd.f32 %v1913, %v1978
      %v1990 = vadd.f32 %v1914, %v1982
      %v1991 = vadd.f32 %v1915, %v1978
      %v1992 = vadd.f32 %v1916, %v1982
      %v1993 = vadd.f32 %v1917, %v1978
      %v1994 = vadd.f32 %v1918, %v1982
      %v1995 = vadd.f32 %v1919, %v1978
      %v1996 = vadd.f32 %v1920, %v1982
      %v1997 = vadd.f32 %v1921, %v1978
      %v1998 = vadd.f32 %v1922, %v1982
      %v1999 = vadd.f32 %v1923, %v1978
      %v2000 = vadd.f32 %v1924, %v1982
      %v2001 = vadd.f32 %v1925, %v1978
      %v2002 = vadd.f32 %v1926, %v1982
      %v2003 = vadd.f32 %v1927, %v1978
      %v2004 = vadd.f32 %v1928, %v1982
      %v2005 = vadd.f32 %v1929, %v1978
      %v2006 = vadd.f32 %v1930, %v1982
      %v2007 = vadd.f32 %v1931, %v1978
      %v2008 = vadd.f32 %v1932, %v1982
      %v2009 = vadd.f32 %v1933, %v1978
      %v2010 = vadd.f32 %v1934, %v1982
      %v2011 = vadd.f32 %v1935, %v1978
      %v2012 = vadd.f32 %v1936, %v1982
      %v2013 = vadd.f32 %v1937, %v1978
      %v2014 = vadd.f32 %v1938, %v1982
      %v2015 = vadd.f32 %v1939, %v1978
      %v2016 = vadd.f32 %v1940, %v1982
      %v2017 = vadd.f32 %v1941, %v1978
      %v2018 = vadd.f32 %v1942, %v1982
      %v2019 = vadd.f32 %v1943, %v1978
      %v2020 = vadd.f32 %v1944, %v1982
      %v2021 = vadd.f32 %v1945, %v1978
      %v2022 = vadd.f32 %v1946, %v1982
      %v2023 = vadd.f32 %v1947, %v1978
      %v2024 = vadd.f32 %v1948, %v1982
      %v2025 = vadd.f32 %v1949, %v1978
      %v2026 = vadd.f32 %v1950, %v1982
      %v2027 = vadd.f32 %v1951, %v1978
      %v2028 = vadd.f32 %v1952, %v1982
      %v2029 = vadd.f32 %v1953, %v1978
      %v2030 = vadd.f32 %v1954, %v1982
      %v2031 = vadd.f32 %v1955, %v1978
      %v2032 = vadd.f32 %v1956, %v1982
      %v2033 = vadd.f32 %v1957, %v1978
      %v2034 = vadd.f32 %v1958, %v1982
      %v2035 = vadd.f32 %v1959, %v1978
      %v2036 = vadd.f32 %v1960, %v1982
      %v2037 = vadd.f32 %v1961, %v1978
      %v2038 = vadd.f32 %v1962, %v1982
      %v2039 = vadd.f32 %v1963, %v1978
      %v2040 = vadd.f32 %v1964, %v1982
      %v2041 = vadd.f32 %v1965, %v1978
      %v2042 = vadd.f32 %v1966, %v1982
      %v2043 = vadd.f32 %v1967, %v1978
      %v2044 = vadd.f32 %v1968, %v1982
      %v2045 = vadd.f32 %v1969, %v1978
      %v2046 = vadd.f32 %v1970, %v1982
      %v2047 = vadd.f32 %v1971, %v1978
      %v2048 = vadd.f32 %v1972, %v1982
      %v2049 = vmax.f32 %v1985, 0.0
      %v2050 = vmax.f32 %v1986, 0.0
      %v2051 = vmax.f32 %v1987, 0.0
      %v2052 = vmax.f32 %v1988, 0.0
      %v2053 = vmax.f32 %v1989, 0.0
      %v2054 = vmax.f32 %v1990, 0.0
      %v2055 = vmax.f32 %v1991, 0.0
      %v2056 = vmax.f32 %v1992, 0.0
      %v2057 = vmax.f32 %v1993, 0.0
      %v2058 = vmax.f32 %v1994, 0.0
      %v2059 = vmax.f32 %v1995, 0.0
      %v2060 = vmax.f32 %v1996, 0.0
      %v2061 = vmax.f32 %v1997, 0.0
      %v2062 = vmax.f32 %v1998, 0.0
      %v2063 = vmax.f32 %v1999, 0.0
      %v2064 = vmax.f32 %v2000, 0.0
      %v2065 = vmax.f32 %v2001, 0.0
      %v2066 = vmax.f32 %v2002, 0.0
      %v2067 = vmax.f32 %v2003, 0.0
      %v2068 = vmax.f32 %v2004, 0.0
      %v2069 = vmax.f32 %v2005, 0.0
      %v2070 = vmax.f32 %v2006, 0.0
      %v2071 = vmax.f32 %v2007, 0.0
      %v2072 = vmax.f32 %v2008, 0.0
      %v2073 = vmax.f32 %v2009, 0.0
      %v2074 = vmax.f32 %v2010, 0.0
      %v2075 = vmax.f32 %v2011, 0.0
      %v2076 = vmax.f32 %v2012, 0.0
      %v2077 = vmax.f32 %v2013, 0.0
      %v2078 = vmax.f32 %v2014, 0.0
      %v2079 = vmax.f32 %v2015, 0.0
      %v2080 = vmax.f32 %v2016, 0.0
      %v2081 = vmax.f32 %v2017, 0.0
      %v2082 = vmax.f32 %v2018, 0.0
      %v2083 = vmax.f32 %v2019, 0.0
      %v2084 = vmax.f32 %v2020, 0.0
      %v2085 = vmax.f32 %v2021, 0.0
      %v2086 = vmax.f32 %v2022, 0.0
      %v2087 = vmax.f32 %v2023, 0.0
      %v2088 = vmax.f32 %v2024, 0.0
      %v2089 = vmax.f32 %v2025, 0.0
      %v2090 = vmax.f32 %v2026, 0.0
      %v2091 = vmax.f32 %v2027, 0.0
      %v2092 = vmax.f32 %v2028, 0.0
      %v2093 = vmax.f32 %v2029, 0.0
      %v2094 = vmax.f32 %v2030, 0.0
      %v2095 = vmax.f32 %v2031, 0.0
      %v2096 = vmax.f32 %v2032, 0.0
      %v2097 = vmax.f32 %v2033, 0.0
      %v2098 = vmax.f32 %v2034, 0.0
      %v2099 = vmax.f32 %v2035, 0.0
      %v2100 = vmax.f32 %v2036, 0.0
      %v2101 = vmax.f32 %v2037, 0.0
      %v2102 = vmax.f32 %v2038, 0.0
      %v2103 = vmax.f32 %v2039, 0.0
      %v2104 = vmax.f32 %v2040, 0.0
      %v2105 = vmax.f32 %v2041, 0.0
      %v2106 = vmax.f32 %v2042, 0.0
      %v2107 = vmax.f32 %v2043, 0.0
      %v2108 = vmax.f32 %v2044, 0.0
      %v2109 = vmax.f32 %v2045, 0.0
      %v2110 = vmax.f32 %v2046, 0.0
      %v2111 = vmax.f32 %v2047, 0.0
      %v2112 = vmax.f32 %v2048, 0.0
      %v2113 = vpack.c.bf16 %v2051, %v2049
      %v2114 = vpack.c.bf16 %v2052, %v2050
      %v2115 = vpack.c.bf16 %v2055, %v2053
      %v2116 = vpack.c.bf16 %v2056, %v2054
      %v2117 = vpack.c.bf16 %v2059, %v2057
      %v2118 = vpack.c.bf16 %v2060, %v2058
      %v2119 = vpack.c.bf16 %v2063, %v2061
      %v2120 = vpack.c.bf16 %v2064, %v2062
      %v2121 = vpack.c.bf16 %v2067, %v2065
      %v2122 = vpack.c.bf16 %v2068, %v2066
      %v2123 = vpack.c.bf16 %v2071, %v2069
      %v2124 = vpack.c.bf16 %v2072, %v2070
      %v2125 = vpack.c.bf16 %v2075, %v2073
      %v2126 = vpack.c.bf16 %v2076, %v2074
      %v2127 = vpack.c.bf16 %v2079, %v2077
      %v2128 = vpack.c.bf16 %v2080, %v2078
      %v2129 = vpack.c.bf16 %v2083, %v2081
      %v2130 = vpack.c.bf16 %v2084, %v2082
      %v2131 = vpack.c.bf16 %v2087, %v2085
      %v2132 = vpack.c.bf16 %v2088, %v2086
      %v2133 = vpack.c.bf16 %v2091, %v2089
      %v2134 = vpack.c.bf16 %v2092, %v2090
      %v2135 = vpack.c.bf16 %v2095, %v2093
      %v2136 = vpack.c.bf16 %v2096, %v2094
      %v2137 = vpack.c.bf16 %v2099, %v2097
      %v2138 = vpack.c.bf16 %v2100, %v2098
      %v2139 = vpack.c.bf16 %v2103, %v2101
      %v2140 = vpack.c.bf16 %v2104, %v2102
      %v2141 = vpack.c.bf16 %v2107, %v2105
      %v2142 = vpack.c.bf16 %v2108, %v2106
      %v2143 = vpack.c.bf16 %v2111, %v2109
      %v2144 = vpack.c.bf16 %v2112, %v2110
      %v2145 = vld [vmem:[%s3] sm:$0xf]
      %v2146 = vld [vmem:[%s3 + $0x4] sm:$0xf]
      %v2147 = vld [vmem:[%s3 + $0x8] sm:$0xf]
      %v2148 = vld [vmem:[%s3 + $0xc] sm:$0xf]
      %v2149 = vld [vmem:[%s3 + $0x10] sm:$0xf]
      %v2150 = vld [vmem:[%s3 + $0x14] sm:$0xf]
      %v2151 = vld [vmem:[%s3 + $0x18] sm:$0xf]
      %v2152 = vld [vmem:[%s3 + $0x1c] sm:$0xf]
      %v2153 = vld [vmem:[%s3 + $0x20] sm:$0xf]
      %v2154 = vld [vmem:[%s3 + $0x24] sm:$0xf]
      %v2155 = vld [vmem:[%s3 + $0x28] sm:$0xf]
      %v2156 = vld [vmem:[%s3 + $0x2c] sm:$0xf]
      %v2157 = vld [vmem:[%s3 + $0x30] sm:$0xf]
      %v2158 = vld [vmem:[%s3 + $0x34] sm:$0xf]
      %v2159 = vld [vmem:[%s3 + $0x38] sm:$0xf]
      %v2160 = vld [vmem:[%s3 + $0x3c] sm:$0xf]
      %v2161 = vld [vmem:[%s3 + $0x40] sm:$0xf]
      %v2162 = vld [vmem:[%s3 + $0x44] sm:$0xf]
      %v2163 = vld [vmem:[%s3 + $0x48] sm:$0xf]
      %v2164 = vld [vmem:[%s3 + $0x4c] sm:$0xf]
      %v2165 = vld [vmem:[%s4] sm:$0x1]
      %v2167 = vlaneseq
      %v2168 = vshrl.u32 %v2167, 7
      %v2169 = vsub.s32 0, %v2168
      %v2170 = vrot.slane %v2165, %v2169
      %v2192 = vunpack.c.l.b16 %v2145
      %v2193 = vunpack.c.l.b16 %v2146
      %v2194 = vunpack.c.l.b16 %v2147
      %v2195 = vunpack.c.l.b16 %v2148
      %v2196 = vunpack.c.l.b16 %v2149
      %v2197 = vunpack.c.l.b16 %v2150
      %v2198 = vunpack.c.l.b16 %v2151
      %v2199 = vunpack.c.l.b16 %v2152
      %v2200 = vunpack.c.l.b16 %v2153
      %v2201 = vunpack.c.l.b16 %v2154
      %v2202 = vunpack.c.l.b16 %v2155
      %v2203 = vunpack.c.l.b16 %v2156
      %v2204 = vunpack.c.l.b16 %v2157
      %v2205 = vunpack.c.l.b16 %v2158
      %v2206 = vunpack.c.l.b16 %v2159
      %v2207 = vunpack.c.l.b16 %v2160
      %v2208 = vunpack.c.l.b16 %v2161
      %v2209 = vunpack.c.l.b16 %v2162
      %v2210 = vunpack.c.l.b16 %v2163
      %v2211 = vunpack.c.l.b16 %v2164
      %v2212 = vpack.c.b16 %v2193, %v2192
      %v2213 = vpack.c.b16 %v2195, %v2194
      %v2214 = vpack.c.b16 %v2197, %v2196
      %v2215 = vpack.c.b16 %v2199, %v2198
      %v2216 = vpack.c.b16 %v2201, %v2200
      %v2217 = vpack.c.b16 %v2203, %v2202
      %v2218 = vpack.c.b16 %v2205, %v2204
      %v2219 = vpack.c.b16 %v2207, %v2206
      %v2220 = vpack.c.b16 %v2209, %v2208
      %v2221 = vpack.c.b16 %v2211, %v2210
      %v2233 = vsel %vm579, %v2114, 0
      %v2236 = vsel %vm579, %v2116, 0
      %v2239 = vsel %vm579, %v2118, 0
      %v2242 = vsel %vm579, %v2120, 0
      %v2245 = vsel %vm579, %v2122, 0
      %v2248 = vsel %vm579, %v2124, 0
      %v2251 = vsel %vm579, %v2126, 0
      %v2254 = vsel %vm579, %v2128, 0
      %v2257 = vsel %vm579, %v2130, 0
      %v2260 = vsel %vm579, %v2132, 0
      %v2263 = vsel %vm579, %v2134, 0
      %v2266 = vsel %vm579, %v2136, 0
      %v2269 = vsel %vm579, %v2138, 0
      %v2272 = vsel %vm579, %v2140, 0
      %v2275 = vsel %vm579, %v2142, 0
      %v2278 = vsel %vm579, %v2144, 0
      %2280 = vmatprep.subr.bf16.mxu0 0
      %2281 = vmatpush1.bf16.msra.mxu0 %v2212
      %2282 = vmatprep.subr.bf16.mxu0 0
      %2283 = vmatpush1.bf16.msra.mxu0 %v2213
      %2284 = vmatprep.subr.bf16.mxu0 0
      %2285 = vmatpush1.bf16.msra.mxu0 %v2214
      %2286 = vmatprep.subr.bf16.mxu0 0
      %2287 = vmatpush1.bf16.msra.mxu0 %v2215
      %2288 = vmatprep.subr.bf16.mxu0 0
      %2289 = vmatpush1.bf16.msra.mxu0 %v2216
      %2290 = vmatprep.subr.bf16.mxu0 0
      %2291 = vmatpush1.bf16.msra.mxu0 %v2217
      %2292 = vmatprep.subr.bf16.mxu0 0
      %2293 = vmatpush1.bf16.msra.mxu0 %v2218
      %2294 = vmatprep.subr.bf16.mxu0 0
      %2295 = vmatpush1.bf16.msra.mxu0 %v2219
      %2296 = vmatprep.subr.bf16.mxu0 0
      %2297 = vmatpush1.bf16.msra.mxu0 %v2220
      %2298 = vmatprep.subr.bf16.mxu0 0
      %2299 = vmatpush1.bf16.msra.mxu0 %v2221
      %2300 = vmatprep.subr.bf16.mxu0 0
      %2301 = vmatpush1.bf16.msra.mxu0 0
      %2302 = vmatprep.subr.bf16.mxu0 0
      %2303 = vmatpush1.bf16.msra.mxu0 0
      %2304 = vmatprep.subr.bf16.mxu0 0
      %2305 = vmatpush1.bf16.msra.mxu0 0
      %2306 = vmatprep.subr.bf16.mxu0 0
      %2307 = vmatpush1.bf16.msra.mxu0 0
      %2308 = vmatprep.subr.bf16.mxu0 0
      %2309 = vmatpush1.bf16.msra.mxu0 0
      %2310 = vmatprep.subr.bf16.mxu0 0
      %2311 = vmatpush1.bf16.msra.mxu0 0
      %2312 = vmatprep.mubr.bf16.mxu0 %v2233
      %2313 = vmatmul.mubr.bf16.gmra.mrb[0].mxu0 %v2113
      %v2314 = vpop.f32.mrb[0].mxu0
      %v2315 = vadd.f32 %v2170, %v2314
      %v2316 = vpop.f32.mrb[0].mxu0
      %v2317 = vpop.f32.mrb[0].mxu0
      %v2318 = vadd.f32 %v2170, %v2317
      %v2319 = vpop.f32.mrb[0].mxu0
      %2320 = vmatprep.mubr.bf16.mxu0 %v2236
      %2321 = vmatmul.mubr.bf16.gmra.mrb[0].mxu0 %v2115
      %v2322 = vpop.f32.mrb[0].mxu0
      %v2323 = vadd.f32 %v2170, %v2322
      %v2324 = vpop.f32.mrb[0].mxu0
      %v2325 = vpop.f32.mrb[0].mxu0
      %v2326 = vadd.f32 %v2170, %v2325
      %v2327 = vpop.f32.mrb[0].mxu0
      %2328 = vmatprep.mubr.bf16.mxu0 %v2239
      %2329 = vmatmul.mubr.bf16.gmra.mrb[0].mxu0 %v2117
      %v2330 = vpop.f32.mrb[0].mxu0
      %v2331 = vadd.f32 %v2170, %v2330
      %v2332 = vpop.f32.mrb[0].mxu0
      %v2333 = vpop.f32.mrb[0].mxu0
      %v2334 = vadd.f32 %v2170, %v2333
      %v2335 = vpop.f32.mrb[0].mxu0
      %2336 = vmatprep.mubr.bf16.mxu0 %v2242
      %2337 = vmatmul.mubr.bf16.gmra.mrb[0].mxu0 %v2119
      %v2338 = vpop.f32.mrb[0].mxu0
      %v2339 = vadd.f32 %v2170, %v2338
      %v2340 = vpop.f32.mrb[0].mxu0
      %v2341 = vpop.f32.mrb[0].mxu0
      %v2342 = vadd.f32 %v2170, %v2341
      %v2343 = vpop.f32.mrb[0].mxu0
      %2344 = vmatprep.mubr.bf16.mxu0 %v2245
      %2345 = vmatmul.mubr.bf16.gmra.mrb[0].mxu0 %v2121
      %v2346 = vpop.f32.mrb[0].mxu0
      %v2347 = vadd.f32 %v2170, %v2346
      %v2348 = vpop.f32.mrb[0].mxu0
      %v2349 = vpop.f32.mrb[0].mxu0
      %v2350 = vadd.f32 %v2170, %v2349
      %v2351 = vpop.f32.mrb[0].mxu0
      %2352 = vmatprep.mubr.bf16.mxu0 %v2248
      %2353 = vmatmul.mubr.bf16.gmra.mrb[0].mxu0 %v2123
      %v2354 = vpop.f32.mrb[0].mxu0
      %v2355 = vadd.f32 %v2170, %v2354
      %v2356 = vpop.f32.mrb[0].mxu0
      %v2357 = vpop.f32.mrb[0].mxu0
      %v2358 = vadd.f32 %v2170, %v2357
      %v2359 = vpop.f32.mrb[0].mxu0
      %2360 = vmatprep.mubr.bf16.mxu0 %v2251
      %2361 = vmatmul.mubr.bf16.gmra.mrb[0].mxu0 %v2125
      %v2362 = vpop.f32.mrb[0].mxu0
      %v2363 = vadd.f32 %v2170, %v2362
      %v2364 = vpop.f32.mrb[0].mxu0
      %v2365 = vpop.f32.mrb[0].mxu0
      %v2366 = vadd.f32 %v2170, %v2365
      %v2367 = vpop.f32.mrb[0].mxu0
      %2368 = vmatprep.mubr.bf16.mxu0 %v2254
      %2369 = vmatmul.mubr.bf16.gmra.mrb[0].mxu0 %v2127
      %v2370 = vpop.f32.mrb[0].mxu0
      %v2371 = vadd.f32 %v2170, %v2370
      %v2372 = vpop.f32.mrb[0].mxu0
      %v2373 = vpop.f32.mrb[0].mxu0
      %v2374 = vadd.f32 %v2170, %v2373
      %v2375 = vpop.f32.mrb[0].mxu0
      %2376 = vmatprep.mubr.bf16.mxu0 %v2257
      %2377 = vmatmul.mubr.bf16.gmra.mrb[0].mxu0 %v2129
      %v2378 = vpop.f32.mrb[0].mxu0
      %v2379 = vadd.f32 %v2170, %v2378
      %v2380 = vpop.f32.mrb[0].mxu0
      %v2381 = vpop.f32.mrb[0].mxu0
      %v2382 = vadd.f32 %v2170, %v2381
      %v2383 = vpop.f32.mrb[0].mxu0
      %2384 = vmatprep.mubr.bf16.mxu0 %v2260
      %2385 = vmatmul.mubr.bf16.gmra.mrb[0].mxu0 %v2131
      %v2386 = vpop.f32.mrb[0].mxu0
      %v2387 = vadd.f32 %v2170, %v2386
      %v2388 = vpop.f32.mrb[0].mxu0
      %v2389 = vpop.f32.mrb[0].mxu0
      %v2390 = vadd.f32 %v2170, %v2389
      %v2391 = vpop.f32.mrb[0].mxu0
      %2392 = vmatprep.mubr.bf16.mxu0 %v2263
      %2393 = vmatmul.mubr.bf16.gmra.mrb[0].mxu0 %v2133
      %v2394 = vpop.f32.mrb[0].mxu0
      %v2395 = vadd.f32 %v2170, %v2394
      %v2396 = vpop.f32.mrb[0].mxu0
      %v2397 = vpop.f32.mrb[0].mxu0
      %v2398 = vadd.f32 %v2170, %v2397
      %v2399 = vpop.f32.mrb[0].mxu0
      %2400 = vmatprep.mubr.bf16.mxu0 %v2266
      %2401 = vmatmul.mubr.bf16.gmra.mrb[0].mxu0 %v2135
      %v2402 = vpop.f32.mrb[0].mxu0
      %v2403 = vadd.f32 %v2170, %v2402
      %v2404 = vpop.f32.mrb[0].mxu0
      %v2405 = vpop.f32.mrb[0].mxu0
      %v2406 = vadd.f32 %v2170, %v2405
      %v2407 = vpop.f32.mrb[0].mxu0
      %2408 = vmatprep.mubr.bf16.mxu0 %v2269
      %2409 = vmatmul.mubr.bf16.gmra.mrb[0].mxu0 %v2137
      %v2410 = vpop.f32.mrb[0].mxu0
      %v2411 = vadd.f32 %v2170, %v2410
      %v2412 = vpop.f32.mrb[0].mxu0
      %v2413 = vpop.f32.mrb[0].mxu0
      %v2414 = vadd.f32 %v2170, %v2413
      %v2415 = vpop.f32.mrb[0].mxu0
      %2416 = vmatprep.mubr.bf16.mxu0 %v2272
      %2417 = vmatmul.mubr.bf16.gmra.mrb[0].mxu0 %v2139
      %v2418 = vpop.f32.mrb[0].mxu0
      %v2419 = vadd.f32 %v2170, %v2418
      %v2420 = vpop.f32.mrb[0].mxu0
      %v2421 = vpop.f32.mrb[0].mxu0
      %v2422 = vadd.f32 %v2170, %v2421
      %v2423 = vpop.f32.mrb[0].mxu0
      %2424 = vmatprep.mubr.bf16.mxu0 %v2275
      %2425 = vmatmul.mubr.bf16.gmra.mrb[0].mxu0 %v2141
      %v2426 = vpop.f32.mrb[0].mxu0
      %v2427 = vadd.f32 %v2170, %v2426
      %v2428 = vpop.f32.mrb[0].mxu0
      %v2429 = vpop.f32.mrb[0].mxu0
      %v2430 = vadd.f32 %v2170, %v2429
      %v2431 = vpop.f32.mrb[0].mxu0
      %2432 = vmatprep.mubr.bf16.mxu0 %v2278
      %2433 = vmatmul.mubr.bf16.gmra.mrb[0].mxu0 %v2143
      %v2434 = vpop.f32.mrb[0].mxu0
      %v2435 = vadd.f32 %v2170, %v2434
      %v2436 = vpop.f32.mrb[0].mxu0
      %v2437 = vpop.f32.mrb[0].mxu0
      %v2438 = vadd.f32 %v2170, %v2437
      %v2439 = vpop.f32.mrb[0].mxu0
      %2440 = vdwg.mxu0
      %v2441 = vpack.c.bf16 %v2318, %v2315
      %v2442 = vpack.c.bf16 %v2326, %v2323
      %v2443 = vpack.c.bf16 %v2334, %v2331
      %v2444 = vpack.c.bf16 %v2342, %v2339
      %v2445 = vpack.c.bf16 %v2350, %v2347
      %v2446 = vpack.c.bf16 %v2358, %v2355
      %v2447 = vpack.c.bf16 %v2366, %v2363
      %v2448 = vpack.c.bf16 %v2374, %v2371
      %v2449 = vpack.c.bf16 %v2382, %v2379
      %v2450 = vpack.c.bf16 %v2390, %v2387
      %v2451 = vpack.c.bf16 %v2398, %v2395
      %v2452 = vpack.c.bf16 %v2406, %v2403
      %v2453 = vpack.c.bf16 %v2414, %v2411
      %v2454 = vpack.c.bf16 %v2422, %v2419
      %v2455 = vpack.c.bf16 %v2430, %v2427
      %v2456 = vpack.c.bf16 %v2438, %v2435
      %v2473 = vunpack.c.l.b16 %v2441
      %v2474 = vunpack.c.h.b16 %v2441
      %v2475 = vunpack.c.l.b16 %v2442
      %v2476 = vunpack.c.h.b16 %v2442
      %v2477 = vunpack.c.l.b16 %v2443
      %v2478 = vunpack.c.h.b16 %v2443
      %v2479 = vunpack.c.l.b16 %v2444
      %v2480 = vunpack.c.h.b16 %v2444
      %v2481 = vunpack.c.l.b16 %v2445
      %v2482 = vunpack.c.h.b16 %v2445
      %v2483 = vunpack.c.l.b16 %v2446
      %v2484 = vunpack.c.h.b16 %v2446
      %v2485 = vunpack.c.l.b16 %v2447
      %v2486 = vunpack.c.h.b16 %v2447
      %v2487 = vunpack.c.l.b16 %v2448
      %v2488 = vunpack.c.h.b16 %v2448
      %v2489 = vunpack.c.l.b16 %v2449
      %v2490 = vunpack.c.h.b16 %v2449
      %v2491 = vunpack.c.l.b16 %v2450
      %v2492 = vunpack.c.h.b16 %v2450
      %v2493 = vunpack.c.l.b16 %v2451
      %v2494 = vunpack.c.h.b16 %v2451
      %v2495 = vunpack.c.l.b16 %v2452
      %v2496 = vunpack.c.h.b16 %v2452
      %v2497 = vunpack.c.l.b16 %v2453
      %v2498 = vunpack.c.h.b16 %v2453
      %v2499 = vunpack.c.l.b16 %v2454
      %v2500 = vunpack.c.h.b16 %v2454
      %v2501 = vunpack.c.l.b16 %v2455
      %v2502 = vunpack.c.h.b16 %v2455
      %v2503 = vunpack.c.l.b16 %v2456
      %v2504 = vunpack.c.h.b16 %v2456
      %v2505 = vpack.c.b16 %v2473, %v2473
      %v2506 = vpack.c.b16 %v2474, %v2474
      %v2507 = vpack.c.b16 %v2475, %v2475
      %v2508 = vpack.c.b16 %v2476, %v2476
      %v2509 = vpack.c.b16 %v2477, %v2477
      %v2510 = vpack.c.b16 %v2478, %v2478
      %v2511 = vpack.c.b16 %v2479, %v2479
      %v2512 = vpack.c.b16 %v2480, %v2480
      %v2513 = vpack.c.b16 %v2481, %v2481
      %v2514 = vpack.c.b16 %v2482, %v2482
      %v2515 = vpack.c.b16 %v2483, %v2483
      %v2516 = vpack.c.b16 %v2484, %v2484
      %v2517 = vpack.c.b16 %v2485, %v2485
      %v2518 = vpack.c.b16 %v2486, %v2486
      %v2519 = vpack.c.b16 %v2487, %v2487
      %v2520 = vpack.c.b16 %v2488, %v2488
      %v2521 = vpack.c.b16 %v2489, %v2489
      %v2522 = vpack.c.b16 %v2490, %v2490
      %v2523 = vpack.c.b16 %v2491, %v2491
      %v2524 = vpack.c.b16 %v2492, %v2492
      %v2525 = vpack.c.b16 %v2493, %v2493
      %v2526 = vpack.c.b16 %v2494, %v2494
      %v2527 = vpack.c.b16 %v2495, %v2495
      %v2528 = vpack.c.b16 %v2496, %v2496
      %v2529 = vpack.c.b16 %v2497, %v2497
      %v2530 = vpack.c.b16 %v2498, %v2498
      %v2531 = vpack.c.b16 %v2499, %v2499
      %v2532 = vpack.c.b16 %v2500, %v2500
      %v2533 = vpack.c.b16 %v2501, %v2501
      %v2534 = vpack.c.b16 %v2502, %v2502
      %v2535 = vpack.c.b16 %v2503, %v2503
      %v2536 = vpack.c.b16 %v2504, %v2504
      %vm2569 = vcmask 191488
      %2570 = vst.msk [vmem:[%s246] sm:$0xf] %vm2569, %v2505
      %2571 = vst.msk [vmem:[%s246 + $0x4] sm:$0xf] %vm2569, %v2506
      %2572 = vst.msk [vmem:[%s246 + $0x8] sm:$0xf] %vm2569, %v2507
      %2573 = vst.msk [vmem:[%s246 + $0xc] sm:$0xf] %vm2569, %v2508
      %2574 = vst.msk [vmem:[%s246 + $0x10] sm:$0xf] %vm2569, %v2509
      %2575 = vst.msk [vmem:[%s246 + $0x14] sm:$0xf] %vm2569, %v2510
      %2576 = vst.msk [vmem:[%s246 + $0x18] sm:$0xf] %vm2569, %v2511
      %2577 = vst.msk [vmem:[%s246 + $0x1c] sm:$0xf] %vm2569, %v2512
      %2578 = vst.msk [vmem:[%s246 + $0x20] sm:$0xf] %vm2569, %v2513
      %2579 = vst.msk [vmem:[%s246 + $0x24] sm:$0xf] %vm2569, %v2514
      %2580 = vst.msk [vmem:[%s246 + $0x28] sm:$0xf] %vm2569, %v2515
      %2581 = vst.msk [vmem:[%s246 + $0x2c] sm:$0xf] %vm2569, %v2516
      %2582 = vst.msk [vmem:[%s246 + $0x30] sm:$0xf] %vm2569, %v2517
      %2583 = vst.msk [vmem:[%s246 + $0x34] sm:$0xf] %vm2569, %v2518
      %2584 = vst.msk [vmem:[%s246 + $0x38] sm:$0xf] %vm2569, %v2519
      %2585 = vst.msk [vmem:[%s246 + $0x3c] sm:$0xf] %vm2569, %v2520
      %2586 = vst.msk [vmem:[%s246 + $0x40] sm:$0xf] %vm2569, %v2521
      %2587 = vst.msk [vmem:[%s246 + $0x44] sm:$0xf] %vm2569, %v2522
      %2588 = vst.msk [vmem:[%s246 + $0x48] sm:$0xf] %vm2569, %v2523
      %2589 = vst.msk [vmem:[%s246 + $0x4c] sm:$0xf] %vm2569, %v2524
      %2590 = vst.msk [vmem:[%s246 + $0x50] sm:$0xf] %vm2569, %v2525
      %2591 = vst.msk [vmem:[%s246 + $0x54] sm:$0xf] %vm2569, %v2526
      %2592 = vst.msk [vmem:[%s246 + $0x58] sm:$0xf] %vm2569, %v2527
      %2593 = vst.msk [vmem:[%s246 + $0x5c] sm:$0xf] %vm2569, %v2528
      %2594 = vst.msk [vmem:[%s246 + $0x60] sm:$0xf] %vm2569, %v2529
      %2595 = vst.msk [vmem:[%s246 + $0x64] sm:$0xf] %vm2569, %v2530
      %2596 = vst.msk [vmem:[%s246 + $0x68] sm:$0xf] %vm2569, %v2531
      %2597 = vst.msk [vmem:[%s246 + $0x6c] sm:$0xf] %vm2569, %v2532
      %2598 = vst.msk [vmem:[%s246 + $0x70] sm:$0xf] %vm2569, %v2533
      %2599 = vst.msk [vmem:[%s246 + $0x74] sm:$0xf] %vm2569, %v2534
      %2600 = vst.msk [vmem:[%s246 + $0x78] sm:$0xf] %vm2569, %v2535
      %2601 = vst.msk [vmem:[%s246 + $0x7c] sm:$0xf] %vm2569, %v2536
      %s2602 = smul.u32 32, %s21
      %p2603 = scmp.lt.s32.totalorder %s20, 1
      %s2604 = scalar_select %p2603, %s20, 1
      %p2605 = scmp.lt.s32.totalorder %s2602, 31
      %s2606 = scalar_select %p2605, %s2602, 31
      %s2607 = smul.addr %s2604, 32
      %s2608 = sadd.s32 %s2606, %s2607
      %s2609 = smul.addr %s2608, 4
      %s2610 = scalar_lea.vmem %s5, %s2609
      // Predicated region
      $region41: #{lidar_centernet_head_forward.1} parent=39 // pred_check
        %p2611 = pneg %p158
      $region42: #{lidar_centernet_head_forward.1} parent=39 // pred_check_branch
        %2613 = sbr.rel (%p2611) target = $region44
      $region43: #{lidar_centernet_head_forward.1} parent=39 // pred_region
        %s2614 = smul.u32 32, %s21
      $region44: #{lidar_centernet_head_forward.1} parent=39 // pred_fallthru
        _
    $region40: #{lidar_centernet_head_forward.1} parent=5 // pred_fallthru
      _
    %p2615 = scmp.le.s32.totalorder 2, %s11
    // Predicated region
    $region45: #{lidar_centernet_head_forward.1} parent=5 // pred_check
      %p2616 = pneg %p2615
    $region46: #{lidar_centernet_head_forward.1} parent=5 // pred_check_branch
      %2618 = sbr.rel (%p2616) target = $region48
    $region47: #{lidar_centernet_head_forward.1} parent=5 // pred_region
      %s2619 = ssub.s32 %s11, 2
      // Predicated region
      $region49: #{lidar_centernet_head_forward.1} parent=47 // pred_check
        %p2620 = pneg %p164
      $region50: #{lidar_centernet_head_forward.1} parent=47 // pred_check_branch
        %2622 = sbr.rel (%p2620) target = $region52
      $region51: #{lidar_centernet_head_forward.1} parent=47 // pred_region
        %s2623 = smul.u32 32, %s23
        %p2624 = scmp.lt.s32.totalorder %s22, 1
        %s2625 = scalar_select %p2624, %s22, 1
        %p2626 = scmp.lt.s32.totalorder %s2623, 31
        %s2627 = scalar_select %p2626, %s2623, 31
        %s2628 = smul.addr %s2625, 32
        %s2629 = sadd.s32 %s2627, %s2628
        %s2630 = smul.addr %s2629, 4
        %s2631 = scalar_lea.vmem %s5, %s2630
      $region52: #{lidar_centernet_head_forward.1} parent=47 // pred_fallthru
        _
    $region48: #{lidar_centernet_head_forward.1} parent=5 // pred_fallthru
      _
  $region6: #{lidar_centernet_head_forward.1} parent=0 // loop_footer
    %s15 = sadd.s32 1, %s11
  $region7: #{lidar_centernet_head_forward.1} parent=0 // loop_footer_branch
    %10 = sbr.rel target = $region3
  $region8: #{lidar_centernet_head_forward.1} parent=0 // loop_exit
    _

</llo_original>
